<compile_context>
chip_gen: v7x
topology: tpu7x:2x2x1
jax: 0.10.0
libtpu: 0.0.40
codegen_flags: <defaults>
</compile_context>

<pallas_src>
import functools

import jax
import jax.numpy as jnp
from jax.experimental import pallas as pl
from jax.experimental.pallas import tpu as pltpu


def _attention_kernel(xq_ref, xkv_ref, wq_ref, wk_ref, wv_ref, wproj_ref,
                      bproj_ref, out_ref, attn_ref, acc_ref, *, scale, n_valid):
    """One grid step == (batch b, query tile qt, head h)."""
    h = pl.program_id(2)
    cdt = xq_ref.dtype                      # compute dtype (f32 or bf16)

    xq = xq_ref[0]                          # (tq, C)   queries of this tile
    xkv = xkv_ref[0]                        # (Np, C)   full (padded) sequence
    n_pad = xkv.shape[0]

    # Per-head projections: contiguous, lane-aligned weight tiles (no lane
    # slicing of a fused qkv activation).
    q = jnp.dot(xq, wq_ref[0], preferred_element_type=jnp.float32)    # (tq, hd)
    k = jnp.dot(xkv, wk_ref[0], preferred_element_type=jnp.float32)   # (Np, hd)
    v = jnp.dot(xkv, wv_ref[0], preferred_element_type=jnp.float32)   # (Np, hd)

    # Scores q @ k^T via dot_general (no materialized transpose).
    s = jax.lax.dot_general(
        q.astype(cdt), k.astype(cdt),
        (((1,), (1,)), ((), ())),
        preferred_element_type=jnp.float32) * scale                   # (tq, Np)

    if n_pad > n_valid:   # static: mask padded key columns so softmax ignores them
        col = jax.lax.broadcasted_iota(jnp.int32, s.shape, 1)
        s = jnp.where(col < n_valid, s, -1e30)

    # Numerically-stable softmax; divide moved onto the EUP via reciprocal.
    s_max = jnp.max(s, axis=-1, keepdims=True)
    p = jnp.exp(s - s_max)
    denom = jnp.sum(p, axis=-1, keepdims=True)
    a = p * pl.reciprocal(denom, approx=True)                         # (tq, Np)
    attn_ref[0, 0] = a.astype(attn_ref.dtype)

    # Per-head output and its (fused) contribution to the output projection.
    o_h = jnp.dot(a.astype(cdt), v.astype(cdt),
                  preferred_element_type=jnp.float32)                 # (tq, hd)
    contrib = jnp.dot(o_h.astype(cdt), wproj_ref[0],
                      preferred_element_type=jnp.float32)             # (tq, C)

    @pl.when(h == 0)
    def _init():
        acc_ref[...] = jnp.zeros_like(acc_ref)

    acc_ref[...] += contrib

    @pl.when(h == pl.num_programs(2) - 1)
    def _finalize():
        out_ref[0] = (acc_ref[...] + bproj_ref[...]).astype(out_ref.dtype)


def attention_forward(x, w_qkv, w_proj, b_proj, num_heads, *,
                      compute_dtype=None, q_tile=None):
    """x: (B, N, C); w_qkv: (3C, C); w_proj: (C, C); b_proj: (C,).

    Returns (out, attn) with out: (B, N, C), attn: (B, H, N, N).
    compute_dtype: optional (e.g. jnp.bfloat16) to run the MXU-native fast path.
    """
    B, N, C = x.shape
    assert C % num_heads == 0, "dim must be divisible by num_heads"
    hd = C // num_heads
    scale = float(hd) ** -0.5

    cdt = jnp.dtype(compute_dtype) if compute_dtype is not None else jnp.result_type(x)

    # Pad the sequence to a multiple of 128 so attn/out stores are lane-dense.
    N_pad = ((N + 127) // 128) * 128
    if q_tile is None:
        # 256 fills the v6e/v7x 2x256^2 MXU; pass q_tile=128 on v5e (4x128^2).
        q_tile = 256 if N_pad % 256 == 0 else 128
    tq = q_tile if N_pad % q_tile == 0 else 128
    n_qt = N_pad // tq

    x_c = jnp.asarray(x, cdt)
    x_pad = jnp.pad(x_c, ((0, 0), (0, N_pad - N), (0, 0)))

    w_qkv = jnp.asarray(w_qkv, cdt)       # (3C, C), rows = output features
    w_proj = jnp.asarray(w_proj, cdt)     # (C, C)
    b_proj = jnp.asarray(b_proj, cdt)

    # PyTorch Linear is y = x @ W^T; the 3C axis is ordered (which, head, dim).
    # Split into per-head, lane-aligned blocks so the kernel never slices lanes.
    wq = w_qkv[0 * C:1 * C].reshape(num_heads, hd, C).transpose(0, 2, 1)  # (H, C, hd)
    wk = w_qkv[1 * C:2 * C].reshape(num_heads, hd, C).transpose(0, 2, 1)  # (H, C, hd)
    wv = w_qkv[2 * C:3 * C].reshape(num_heads, hd, C).transpose(0, 2, 1)  # (H, C, hd)
    wproj_h = w_proj.reshape(C, num_heads, hd).transpose(1, 2, 0)         # (H, hd, C)
    bproj2 = b_proj.reshape(1, C)

    kernel = functools.partial(_attention_kernel, scale=scale, n_valid=N)

    out_pad, attn_pad = pl.pallas_call(
        kernel,
        out_shape=(
            jax.ShapeDtypeStruct((B, N_pad, C), cdt),
            jax.ShapeDtypeStruct((B, num_heads, N_pad, N_pad), cdt),
        ),
        grid_spec=pltpu.PrefetchScalarGridSpec(
            num_scalar_prefetch=0,
            grid=(B, n_qt, num_heads),
            in_specs=[
                pl.BlockSpec((1, tq, C), lambda b, qt, h: (b, qt, 0)),      # x (query tile)
                pl.BlockSpec((1, N_pad, C), lambda b, qt, h: (b, 0, 0)),    # x (full seq for K/V)
                pl.BlockSpec((1, C, hd), lambda b, qt, h: (h, 0, 0)),       # Wq[h]
                pl.BlockSpec((1, C, hd), lambda b, qt, h: (h, 0, 0)),       # Wk[h]
                pl.BlockSpec((1, C, hd), lambda b, qt, h: (h, 0, 0)),       # Wv[h]
                pl.BlockSpec((1, hd, C), lambda b, qt, h: (h, 0, 0)),       # Wproj[h]
                pl.BlockSpec((1, C), lambda b, qt, h: (0, 0)),              # proj bias
            ],
            out_specs=[
                pl.BlockSpec((1, tq, C), lambda b, qt, h: (b, qt, 0)),
                pl.BlockSpec((1, 1, tq, N_pad), lambda b, qt, h: (b, h, qt, 0)),
            ],
            scratch_shapes=[pltpu.VMEM((tq, C), jnp.float32)],
        ),
        compiler_params=pltpu.CompilerParams(
            dimension_semantics=("parallel", "parallel", "arbitrary"),
            vmem_limit_bytes=32 * 1024 * 1024,
        ),
    )(x_pad, x_pad, wq, wk, wv, wproj_h, bproj2)

    return out_pad[:, :N, :], attn_pad[:, :, :N, :N]


def _reference(x, w_qkv, w_proj, b_proj, num_heads):
    """Pure-JAX reference mirroring the PyTorch forward."""
    B, N, C = x.shape
    hd = C // num_heads
    scale = hd ** -0.5
    qkv = x @ w_qkv.T                                         # (B, N, 3C)
    qkv = qkv.reshape(B, N, 3, num_heads, hd).transpose(2, 0, 3, 1, 4)
    q, k, v = qkv[0], qkv[1], qkv[2]                          # (B, H, N, hd)
    attn = jnp.einsum("bhnd,bhmd->bhnm", q, k) * scale
    attn = jax.nn.softmax(attn, axis=-1)
    o = jnp.einsum("bhnm,bhmd->bhnd", attn, v)                # (B, H, N, hd)
    o = o.transpose(0, 2, 1, 3).reshape(B, N, C)
    out = o @ w_proj.T + b_proj
    return out, attn


if __name__ == "__main__":
    B, N, C = 2, 8, 32
    num_heads = 8

    key = jax.random.PRNGKey(0)
    kx, kw1, kw2, kb = jax.random.split(key, 4)

    bound = 1.0 / (C ** 0.5)
    w_qkv = jax.random.uniform(kw1, (3 * C, C), jnp.float32, -bound, bound)
    w_proj = jax.random.uniform(kw2, (C, C), jnp.float32, -bound, bound)
    b_proj = jax.random.uniform(kb, (C,), jnp.float32, -bound, bound)
    x = jax.random.normal(kx, (B, N, C), jnp.float32)

    # f32 path (compute dtype follows the input dtype).
    out, attn = attention_forward(x, w_qkv, w_proj, b_proj, num_heads)
    jax.block_until_ready((out, attn))

    out_ref, attn_ref = _reference(x, w_qkv, w_proj, b_proj, num_heads)
    assert out.shape == (B, N, C) and attn.shape == (B, num_heads, N, N)
    # Tolerance covers the EUP approximate-reciprocal softmax denominator.
    assert jnp.allclose(out, out_ref, atol=5e-3, rtol=5e-3)
    assert jnp.allclose(attn, attn_ref, atol=5e-3, rtol=5e-3)

    # bf16 fast path (MXU-native operands, f32 accumulation); loose tolerance.
    out_bf, attn_bf = attention_forward(x, w_qkv, w_proj, b_proj, num_heads,
                                        compute_dtype=jnp.bfloat16)
    jax.block_until_ready((out_bf, attn_bf))
    assert jnp.allclose(out_bf.astype(jnp.float32), out_ref, atol=1e-1, rtol=1e-1)
    assert jnp.allclose(attn_bf.astype(jnp.float32), attn_ref, atol=1e-1, rtol=1e-1)

    print("KERNEL_OK")
</pallas_src>

<mosaic_0001>
module attributes {stable_mosaic.version = 11 : i64} {
  func.func @_attention_kernel(%arg0: i32, %arg1: i32, %arg2: i32, %arg3: memref<1x128x32xf32, #tpu.memory_space<vmem>>, %arg4: memref<1x128x32xf32, #tpu.memory_space<vmem>>, %arg5: memref<1x32x4xf32, #tpu.memory_space<vmem>>, %arg6: memref<1x32x4xf32, #tpu.memory_space<vmem>>, %arg7: memref<1x32x4xf32, #tpu.memory_space<vmem>>, %arg8: memref<1x4x32xf32, #tpu.memory_space<vmem>>, %arg9: memref<1x32xf32, #tpu.memory_space<vmem>>, %arg10: memref<1x128x32xf32, #tpu.memory_space<vmem>>, %arg11: memref<1x1x128x128xf32, #tpu.memory_space<vmem>>, %arg12: memref<128x32xf32, #tpu.memory_space<vmem>>) attributes {dimension_semantics = [#tpu.dimension_semantics<parallel>, #tpu.dimension_semantics<parallel>, #tpu.dimension_semantics<arbitrary>], iteration_bounds = array<i64: 2, 1, 8>, scalar_prefetch = 0 : i64, scratch_operands = 1 : i64, tpu.core_type = #tpu.core_type<tc>, window_params = [{transform_indices = @transform_0, window_bounds = array<i64: 1, 128, 32>}, {transform_indices = @transform_1, window_bounds = array<i64: 1, 128, 32>}, {transform_indices = @transform_2, window_bounds = array<i64: 1, 32, 4>}, {transform_indices = @transform_3, window_bounds = array<i64: 1, 32, 4>}, {transform_indices = @transform_4, window_bounds = array<i64: 1, 32, 4>}, {transform_indices = @transform_5, window_bounds = array<i64: 1, 4, 32>}, {pipeline_mode = #tpu.pipeline_mode<synchronous>, transform_indices = @transform_6, window_bounds = array<i64: 1, 32>}, {transform_indices = @transform_7, window_bounds = array<i64: 1, 128, 32>}, {transform_indices = @transform_8, window_bounds = array<i64: 1, 1, 128, 128>}]} {
    %c0 = arith.constant 0 : index
    %c0_0 = arith.constant 0 : index
    %c0_1 = arith.constant 0 : index
    %0 = vector.load %arg3[%c0, %c0_0, %c0_1] : memref<1x128x32xf32, #tpu.memory_space<vmem>>, vector<1x128x32xf32>
    %1 = vector.shape_cast %0 : vector<1x128x32xf32> to vector<128x32xf32>
    %c0_2 = arith.constant 0 : index
    %c0_3 = arith.constant 0 : index
    %c0_4 = arith.constant 0 : index
    %2 = vector.load %arg4[%c0_2, %c0_3, %c0_4] : memref<1x128x32xf32, #tpu.memory_space<vmem>>, vector<1x128x32xf32>
    %3 = vector.shape_cast %2 : vector<1x128x32xf32> to vector<128x32xf32>
    %c0_5 = arith.constant 0 : index
    %c0_6 = arith.constant 0 : index
    %c0_7 = arith.constant 0 : index
    %4 = vector.load %arg5[%c0_5, %c0_6, %c0_7] : memref<1x32x4xf32, #tpu.memory_space<vmem>>, vector<1x32x4xf32>
    %5 = vector.shape_cast %4 : vector<1x32x4xf32> to vector<32x4xf32>
    %cst = arith.constant dense<0.000000e+00> : vector<128x4xf32>
    %6 = tpu.matmul %1, %5, %cst {dimension_numbers = #tpu.dot_dimension_numbers<[1], [0], [0], [1], [0, 0, 1, 1], [], []>} : vector<128x32xf32>, vector<32x4xf32>, vector<128x4xf32> -> vector<128x4xf32>
    %c0_8 = arith.constant 0 : index
    %c0_9 = arith.constant 0 : index
    %c0_10 = arith.constant 0 : index
    %7 = vector.load %arg6[%c0_8, %c0_9, %c0_10] : memref<1x32x4xf32, #tpu.memory_space<vmem>>, vector<1x32x4xf32>
    %8 = vector.shape_cast %7 : vector<1x32x4xf32> to vector<32x4xf32>
    %cst_11 = arith.constant dense<0.000000e+00> : vector<128x4xf32>
    %9 = tpu.matmul %3, %8, %cst_11 {dimension_numbers = #tpu.dot_dimension_numbers<[1], [0], [0], [1], [0, 0, 1, 1], [], []>} : vector<128x32xf32>, vector<32x4xf32>, vector<128x4xf32> -> vector<128x4xf32>
    %c0_12 = arith.constant 0 : index
    %c0_13 = arith.constant 0 : index
    %c0_14 = arith.constant 0 : index
    %10 = vector.load %arg7[%c0_12, %c0_13, %c0_14] : memref<1x32x4xf32, #tpu.memory_space<vmem>>, vector<1x32x4xf32>
    %11 = vector.shape_cast %10 : vector<1x32x4xf32> to vector<32x4xf32>
    %cst_15 = arith.constant dense<0.000000e+00> : vector<128x4xf32>
    %12 = tpu.matmul %3, %11, %cst_15 {dimension_numbers = #tpu.dot_dimension_numbers<[1], [0], [0], [1], [0, 0, 1, 1], [], []>} : vector<128x32xf32>, vector<32x4xf32>, vector<128x4xf32> -> vector<128x4xf32>
    %cst_16 = arith.constant dense<0.000000e+00> : vector<128x128xf32>
    %13 = tpu.matmul %6, %9, %cst_16 {dimension_numbers = #tpu.dot_dimension_numbers<[1], [1], [0], [0], [0, 0, 1, 0], [], []>} : vector<128x4xf32>, vector<128x4xf32>, vector<128x128xf32> -> vector<128x128xf32>
    %cst_17 = arith.constant 5.000000e-01 : f32
    %14 = vector.broadcast %cst_17 : f32 to vector<128x128xf32>
    %15 = arith.mulf %13, %14 : vector<128x128xf32>
    %16 = tpu.iota {dimensions = array<i32: 1>} : vector<128x128xi32>
    %c8_i32 = arith.constant 8 : i32
    %17 = vector.broadcast %c8_i32 : i32 to vector<128x128xi32>
    %18 = arith.cmpi slt, %16, %17 : vector<128x128xi32>
    %cst_18 = arith.constant -1.000000e+30 : f32
    %19 = vector.broadcast %cst_18 : f32 to vector<128x128xf32>
    %20 = arith.select %18, %15, %19 : vector<128x128xi1>, vector<128x128xf32>
    %cst_19 = arith.constant dense<0xFF800000> : vector<128xf32>
    %21 = vector.multi_reduction <maximumf>, %20, %cst_19 [1] : vector<128x128xf32> to vector<128xf32>
    %22 = vector.shape_cast %21 : vector<128xf32> to vector<128x1xf32>
    %23 = vector.broadcast %22 : vector<128x1xf32> to vector<128x128xf32>
    %24 = arith.subf %20, %23 : vector<128x128xf32>
    %25 = math.exp %24 : vector<128x128xf32>
    %cst_20 = arith.constant dense<0.000000e+00> : vector<128xf32>
    %26 = vector.multi_reduction <add>, %25, %cst_20 [1] : vector<128x128xf32> to vector<128xf32>
    %27 = vector.shape_cast %26 : vector<128xf32> to vector<128x1xf32>
    %28 = tpu.reciprocal %27 {approx = true} : vector<128x1xf32> -> vector<128x1xf32>
    %29 = vector.broadcast %28 : vector<128x1xf32> to vector<128x128xf32>
    %30 = arith.mulf %25, %29 : vector<128x128xf32>
    %c0_21 = arith.constant 0 : index
    %c0_22 = arith.constant 0 : index
    %c0_23 = arith.constant 0 : index
    %c0_24 = arith.constant 0 : index
    %31 = vector.load %arg11[%c0_21, %c0_22, %c0_23, %c0_24] : memref<1x1x128x128xf32, #tpu.memory_space<vmem>>, vector<1x1x128x128xf32>
    %32 = vector.shape_cast %31 : vector<1x1x128x128xf32> to vector<128x128xf32>
    %33 = vector.shape_cast %30 : vector<128x128xf32> to vector<1x1x128x128xf32>
    tpu.vector_store %arg11[%c0_21, %c0_22, %c0_23, %c0_24], %33 {strides = array<i32>} : memref<1x1x128x128xf32, #tpu.memory_space<vmem>>, vector<1x1x128x128xf32>,
    %cst_25 = arith.constant dense<0.000000e+00> : vector<128x4xf32>
    %34 = tpu.matmul %30, %12, %cst_25 {dimension_numbers = #tpu.dot_dimension_numbers<[1], [0], [0], [1], [0, 0, 1, 1], [], []>} : vector<128x128xf32>, vector<128x4xf32>, vector<128x4xf32> -> vector<128x4xf32>
    %c0_26 = arith.constant 0 : index
    %c0_27 = arith.constant 0 : index
    %c0_28 = arith.constant 0 : index
    %35 = vector.load %arg8[%c0_26, %c0_27, %c0_28] : memref<1x4x32xf32, #tpu.memory_space<vmem>>, vector<1x4x32xf32>
    %36 = vector.shape_cast %35 : vector<1x4x32xf32> to vector<4x32xf32>
    %cst_29 = arith.constant dense<0.000000e+00> : vector<128x32xf32>
    %37 = tpu.matmul %34, %36, %cst_29 {dimension_numbers = #tpu.dot_dimension_numbers<[1], [0], [0], [1], [0, 0, 1, 1], [], []>} : vector<128x4xf32>, vector<4x32xf32>, vector<128x32xf32> -> vector<128x32xf32>
    %c0_i32 = arith.constant 0 : i32
    %38 = arith.cmpi eq, %arg2, %c0_i32 : i32
    %39 = arith.extui %38 : i1 to i32
    %c0_i32_30 = arith.constant 0 : i32
    %40 = arith.cmpi ne, %39, %c0_i32_30 : i32
    scf.if %40 {
      %cst_36 = arith.constant 0.000000e+00 : f32
      %47 = vector.broadcast %cst_36 : f32 to vector<128x32xf32>
      %c0_37 = arith.constant 0 : index
      %c0_38 = arith.constant 0 : index
      %48 = vector.load %arg12[%c0_37, %c0_38] : memref<128x32xf32, #tpu.memory_space<vmem>>, vector<128x32xf32>
      tpu.vector_store %arg12[%c0_37, %c0_38], %47 {strides = array<i32>} : memref<128x32xf32, #tpu.memory_space<vmem>>, vector<128x32xf32>,
    } else {
    }
    %c0_31 = arith.constant 0 : index
    %c0_32 = arith.constant 0 : index
    %41 = vector.load %arg12[%c0_31, %c0_32] : memref<128x32xf32, #tpu.memory_space<vmem>>, vector<128x32xf32>
    %42 = arith.addf %41, %37 : vector<128x32xf32>
    %c0_33 = arith.constant 0 : index
    %c0_34 = arith.constant 0 : index
    %43 = vector.load %arg12[%c0_33, %c0_34] : memref<128x32xf32, #tpu.memory_space<vmem>>, vector<128x32xf32>
    tpu.vector_store %arg12[%c0_33, %c0_34], %42 {strides = array<i32>} : memref<128x32xf32, #tpu.memory_space<vmem>>, vector<128x32xf32>,
    %c7_i32 = arith.constant 7 : i32
    %44 = arith.cmpi eq, %arg2, %c7_i32 : i32
    %45 = arith.extui %44 : i1 to i32
    %c0_i32_35 = arith.constant 0 : i32
    %46 = arith.cmpi ne, %45, %c0_i32_35 : i32
    scf.if %46 {
      %c0_36 = arith.constant 0 : index
      %c0_37 = arith.constant 0 : index
      %47 = vector.load %arg12[%c0_36, %c0_37] : memref<128x32xf32, #tpu.memory_space<vmem>>, vector<128x32xf32>
      %c0_38 = arith.constant 0 : index
      %c0_39 = arith.constant 0 : index
      %48 = vector.load %arg9[%c0_38, %c0_39] : memref<1x32xf32, #tpu.memory_space<vmem>>, vector<1x32xf32>
      %49 = vector.broadcast %48 : vector<1x32xf32> to vector<128x32xf32>
      %50 = arith.addf %47, %49 : vector<128x32xf32>
      %c0_40 = arith.constant 0 : index
      %c0_41 = arith.constant 0 : index
      %c0_42 = arith.constant 0 : index
      %51 = vector.load %arg10[%c0_40, %c0_41, %c0_42] : memref<1x128x32xf32, #tpu.memory_space<vmem>>, vector<1x128x32xf32>
      %52 = vector.shape_cast %51 : vector<1x128x32xf32> to vector<128x32xf32>
      %53 = vector.shape_cast %50 : vector<128x32xf32> to vector<1x128x32xf32>
      tpu.vector_store %arg10[%c0_40, %c0_41, %c0_42], %53 {strides = array<i32>} : memref<1x128x32xf32, #tpu.memory_space<vmem>>, vector<1x128x32xf32>,
    } else {
    }
    return
  }
  func.func @transform_0(%arg0: i32, %arg1: i32, %arg2: i32) -> (i32, i32, i32) {
    %c0_i32 = arith.constant 0 : i32
    %c0_i32_0 = arith.constant 0 : i32
    return %arg0, %arg1, %c0_i32 : i32, i32, i32
  }
  func.func @transform_1(%arg0: i32, %arg1: i32, %arg2: i32) -> (i32, i32, i32) {
    %c0_i32 = arith.constant 0 : i32
    %c0_i32_0 = arith.constant 0 : i32
    %c0_i32_1 = arith.constant 0 : i32
    return %arg0, %c0_i32, %c0_i32_0 : i32, i32, i32
  }
  func.func @transform_2(%arg0: i32, %arg1: i32, %arg2: i32) -> (i32, i32, i32) {
    %c0_i32 = arith.constant 0 : i32
    %c0_i32_0 = arith.constant 0 : i32
    %c0_i32_1 = arith.constant 0 : i32
    return %arg2, %c0_i32, %c0_i32_0 : i32, i32, i32
  }
  func.func @transform_3(%arg0: i32, %arg1: i32, %arg2: i32) -> (i32, i32, i32) {
    %c0_i32 = arith.constant 0 : i32
    %c0_i32_0 = arith.constant 0 : i32
    %c0_i32_1 = arith.constant 0 : i32
    return %arg2, %c0_i32, %c0_i32_0 : i32, i32, i32
  }
  func.func @transform_4(%arg0: i32, %arg1: i32, %arg2: i32) -> (i32, i32, i32) {
    %c0_i32 = arith.constant 0 : i32
    %c0_i32_0 = arith.constant 0 : i32
    %c0_i32_1 = arith.constant 0 : i32
    return %arg2, %c0_i32, %c0_i32_0 : i32, i32, i32
  }
  func.func @transform_5(%arg0: i32, %arg1: i32, %arg2: i32) -> (i32, i32, i32) {
    %c0_i32 = arith.constant 0 : i32
    %c0_i32_0 = arith.constant 0 : i32
    %c0_i32_1 = arith.constant 0 : i32
    return %arg2, %c0_i32, %c0_i32_0 : i32, i32, i32
  }
  func.func @transform_6(%arg0: i32, %arg1: i32, %arg2: i32) -> (i32, i32) {
    %c0_i32 = arith.constant 0 : i32
    %c0_i32_0 = arith.constant 0 : i32
    %c0_i32_1 = arith.constant 0 : i32
    return %c0_i32, %c0_i32_0 : i32, i32
  }
  func.func @transform_7(%arg0: i32, %arg1: i32, %arg2: i32) -> (i32, i32, i32) {
    %c0_i32 = arith.constant 0 : i32
    %c0_i32_0 = arith.constant 0 : i32
    return %arg0, %arg1, %c0_i32 : i32, i32, i32
  }
  func.func @transform_8(%arg0: i32, %arg1: i32, %arg2: i32) -> (i32, i32, i32, i32) {
    %c0_i32 = arith.constant 0 : i32
    %c0_i32_0 = arith.constant 0 : i32
    return %arg0, %arg2, %arg1, %c0_i32 : i32, i32, i32, i32
  }
}

</mosaic_0001>

<llo_original>
// kernel: tpu_custom_call.1
$region0: #{tpu_custom_call.1}
  #allocation0 [shape = 'u32[]', space=smem, size = 0x4, offset = 0x4, fixed_abs, tag = 'smem constant byte address 0x4 - core index']
  #allocation1 [shape = 'u32[144,128]{1,0:T(1,128)}', space=vmem, size = 0x12000, scoped, tag = 'internal scratch']
  #allocation2 [shape = 'f32[128,32]{1,0:T(8,128)}', space=vmem, size = 0x10000, scoped, tag = 'scratch operand']
  %s0 = inlined_call_operand.vmem [shape: f32[2,128,32], index: 0, kind: input, shape index: {}]
  %s1 = inlined_call_operand.vmem [shape: f32[2,128,32], index: 1, kind: input, shape index: {}]
  %s2 = inlined_call_operand.vmem [shape: f32[8,32,4], index: 2, kind: input, shape index: {}]
  %s3 = inlined_call_operand.vmem [shape: f32[8,32,4], index: 3, kind: input, shape index: {}]
  %s4 = inlined_call_operand.vmem [shape: f32[8,32,4], index: 4, kind: input, shape index: {}]
  %s5 = inlined_call_operand.vmem [shape: f32[8,4,32], index: 5, kind: input, shape index: {}]
  %s6 = inlined_call_operand.vmem [shape: f32[1,32], index: 6, kind: input, shape index: {}]
  %s7 = inlined_call_operand.vmem [shape: f32[2,128,32], index: 7, kind: output, shape index: {0}]
  %s8 = inlined_call_operand.hbm [shape: f32[2,8,128,128], index: 8, kind: output, shape index: {1}]
  %9 = xla_tuple %s7, %s8
  %s10 = sld [smem:[#allocation0]]
  $region77: #{tpu_custom_call.1} parent=0
    _
  %s12 = ssub.s32 1, %s10
  %s13 = scalar_select 0, %s12, %s10
  $region1: #{tpu_custom_call.1} parent=0
    #allocation3 [shape = 'u8[131072]{0}', space=vmem, size = 0x20000, scoped, tag = 'output window, operand 1']
    #allocation4 [shape = 's32[2]{0}', space=sflag, size = 0x8, scoped, tag = 'scoped memory for tpu_custom_call.1']
    %14 = vsyncpa [#allocation4], 0
    %s15 = scalar_lea.sflag [#allocation4], 1
    %16 = vsyncpa %s15, 0
    loop: start=0, step=1, limit=18
    $region2: #{tpu_custom_call.1} parent=1 // loop_pre_header
      _
    $region3: #{tpu_custom_call.1} parent=1 // loop_header
      %s18 = sphi 0, %s22
      %p19 = scmp.ge.s32.totalorder %s18, 18
      %s25 = sphi 0, %s44
      %s26 = sphi 0, %s40
      %s27 = sphi 0, %s36
      %s28 = sphi 0, %s25
      %s29 = sphi 0, %s26
      %s30 = sphi 0, %s27
      %s31 = sphi 0, %s28
      %s32 = sphi 0, %s29
      %s33 = sphi 0, %s30
      %s49 = sphi 0, %s51
      %s52 = sphi 0, %s49
      %s53 = sphi 0, %s52
      %s69 = sphi 0, %s53
      %s75 = sphi 0, %s77
      %s78 = sphi 0, %s75
      %s79 = sphi 0, %s78
      %s95 = sphi 0, %s79
      %s101 = sphi 0, %s103
      %s104 = sphi 0, %s101
      %s105 = sphi 0, %s104
      %s121 = sphi 0, %s105
      %s127 = sphi 0, %s129
      %s130 = sphi 0, %s127
      %s131 = sphi 0, %s130
      %s147 = sphi 0, %s131
      %s153 = sphi 0, %s155
      %s156 = sphi 0, %s153
      %s157 = sphi 0, %s156
      %s173 = sphi 0, %s157
      %s179 = sphi 0, %s181
      %s182 = sphi 0, %s179
      %s183 = sphi 0, %s182
      %s199 = sphi 0, %s183
      %s203 = sphi 0, %s203
      %s205 = sphi 0, %s203
      %s206 = sphi 0, %s205
      %s220 = sphi 0, %s206
      %s228 = sphi 0, %s230
      %s231 = sphi 0, %s228
      %s232 = sphi 0, %s231
      %s248 = sphi 0, %s232
      %s258 = sphi 0, %s260
      %s261 = sphi 0, %s258
      %s262 = sphi 0, %s261
      %s278 = sphi 0, %s262
    $region4: #{tpu_custom_call.1} parent=1 // loop_header_branch
      %21 = sbr.rel (%p19) target = $region8
    $region5: #{tpu_custom_call.1} parent=1 // loop_body
      %s23 = ssub.s32 %s18, 1
      %s24 = ssub.s32 %s18, 2
      %s34 = sadd.s32 1, %s27
      %p35 = scmp.ge.s32.totalorder %s34, 8
      %s36 = scalar_select %p35, 0, %s34
      %s37 = sadd.s32 1, %s26
      %s38 = scalar_select %p35, %s37, %s26
      %p39 = scmp.ge.s32.totalorder %s38, 1
      %s40 = scalar_select %p39, 0, %s38
      %s41 = sadd.s32 1, %s25
      %s42 = scalar_select %p39, %s41, %s25
      %p43 = scmp.ge.s32.totalorder %s42, 2
      %s44 = scalar_select %p43, 0, %s42
      %s45 = ssub.s32 %s25, %s44
      %s46 = ssub.s32 %s26, %s40
      %s47 = sor.u32 %s45, %s46
      %p48 = scmp.eq.s32.totalorder %s47, 0
      %s50 = sadd.s32 %s49, 1
      %s51 = scalar_select %p48, %s49, %s50
      %p54 = pneg %p48
      %p55 = scmp.eq.s32.totalorder %s18, 15
      %p56 = por %p54, %p55
      %p57 = scmp.ne.s32.totalorder %s49, %s52
      %p58 = scmp.eq.s32.totalorder %s18, 0
      %p59 = por %p57, %p58
      %p60 = scmp.ne.s32.totalorder %s49, %s52
      %p61 = scmp.eq.s32.totalorder %s23, 15
      %p62 = por %p60, %p61
      %p63 = scmp.ne.s32.totalorder %s52, %s53
      %p64 = scmp.eq.s32.totalorder %s23, 0
      %p65 = por %p63, %p64
      %p66 = scmp.ne.s32.totalorder %s52, %s53
      %p67 = scmp.eq.s32.totalorder %s24, 15
      %p68 = por %p66, %p67
      %p70 = scmp.ne.s32.totalorder %s53, %s69
      %p71 = scmp.eq.s32.totalorder %s24, 0
      %p72 = por %p70, %p71
      %s73 = ssub.s32 %s25, %s44
      %p74 = scmp.eq.s32.totalorder %s73, 0
      %s76 = sadd.s32 %s75, 1
      %s77 = scalar_select %p74, %s75, %s76
      %p80 = pneg %p74
      %p81 = scmp.eq.s32.totalorder %s18, 15
      %p82 = por %p80, %p81
      %p83 = scmp.ne.s32.totalorder %s75, %s78
      %p84 = scmp.eq.s32.totalorder %s18, 0
      %p85 = por %p83, %p84
      %p86 = scmp.ne.s32.totalorder %s75, %s78
      %p87 = scmp.eq.s32.totalorder %s23, 15
      %p88 = por %p86, %p87
      %p89 = scmp.ne.s32.totalorder %s78, %s79
      %p90 = scmp.eq.s32.totalorder %s23, 0
      %p91 = por %p89, %p90
      %p92 = scmp.ne.s32.totalorder %s78, %s79
      %p93 = scmp.eq.s32.totalorder %s24, 15
      %p94 = por %p92, %p93
      %p96 = scmp.ne.s32.totalorder %s79, %s95
      %p97 = scmp.eq.s32.totalorder %s24, 0
      %p98 = por %p96, %p97
      %s99 = ssub.s32 %s27, %s36
      %p100 = scmp.eq.s32.totalorder %s99, 0
      %s102 = sadd.s32 %s101, 1
      %s103 = scalar_select %p100, %s101, %s102
      %p106 = pneg %p100
      %p107 = scmp.eq.s32.totalorder %s18, 15
      %p108 = por %p106, %p107
      %p109 = scmp.ne.s32.totalorder %s101, %s104
      %p110 = scmp.eq.s32.totalorder %s18, 0
      %p111 = por %p109, %p110
      %p112 = scmp.ne.s32.totalorder %s101, %s104
      %p113 = scmp.eq.s32.totalorder %s23, 15
      %p114 = por %p112, %p113
      %p115 = scmp.ne.s32.totalorder %s104, %s105
      %p116 = scmp.eq.s32.totalorder %s23, 0
      %p117 = por %p115, %p116
      %p118 = scmp.ne.s32.totalorder %s104, %s105
      %p119 = scmp.eq.s32.totalorder %s24, 15
      %p120 = por %p118, %p119
      %p122 = scmp.ne.s32.totalorder %s105, %s121
      %p123 = scmp.eq.s32.totalorder %s24, 0
      %p124 = por %p122, %p123
      %s125 = ssub.s32 %s27, %s36
      %p126 = scmp.eq.s32.totalorder %s125, 0
      %s128 = sadd.s32 %s127, 1
      %s129 = scalar_select %p126, %s127, %s128
      %p132 = pneg %p126
      %p133 = scmp.eq.s32.totalorder %s18, 15
      %p134 = por %p132, %p133
      %p135 = scmp.ne.s32.totalorder %s127, %s130
      %p136 = scmp.eq.s32.totalorder %s18, 0
      %p137 = por %p135, %p136
      %p138 = scmp.ne.s32.totalorder %s127, %s130
      %p139 = scmp.eq.s32.totalorder %s23, 15
      %p140 = por %p138, %p139
      %p141 = scmp.ne.s32.totalorder %s130, %s131
      %p142 = scmp.eq.s32.totalorder %s23, 0
      %p143 = por %p141, %p142
      %p144 = scmp.ne.s32.totalorder %s130, %s131
      %p145 = scmp.eq.s32.totalorder %s24, 15
      %p146 = por %p144, %p145
      %p148 = scmp.ne.s32.totalorder %s131, %s147
      %p149 = scmp.eq.s32.totalorder %s24, 0
      %p150 = por %p148, %p149
      %s151 = ssub.s32 %s27, %s36
      %p152 = scmp.eq.s32.totalorder %s151, 0
      %s154 = sadd.s32 %s153, 1
      %s155 = scalar_select %p152, %s153, %s154
      %p158 = pneg %p152
      %p159 = scmp.eq.s32.totalorder %s18, 15
      %p160 = por %p158, %p159
      %p161 = scmp.ne.s32.totalorder %s153, %s156
      %p162 = scmp.eq.s32.totalorder %s18, 0
      %p163 = por %p161, %p162
      %p164 = scmp.ne.s32.totalorder %s153, %s156
      %p165 = scmp.eq.s32.totalorder %s23, 15
      %p166 = por %p164, %p165
      %p167 = scmp.ne.s32.totalorder %s156, %s157
      %p168 = scmp.eq.s32.totalorder %s23, 0
      %p169 = por %p167, %p168
      %p170 = scmp.ne.s32.totalorder %s156, %s157
      %p171 = scmp.eq.s32.totalorder %s24, 15
      %p172 = por %p170, %p171
      %p174 = scmp.ne.s32.totalorder %s157, %s173
      %p175 = scmp.eq.s32.totalorder %s24, 0
      %p176 = por %p174, %p175
      %s177 = ssub.s32 %s27, %s36
      %p178 = scmp.eq.s32.totalorder %s177, 0
      %s180 = sadd.s32 %s179, 1
      %s181 = scalar_select %p178, %s179, %s180
      %p184 = pneg %p178
      %p185 = scmp.eq.s32.totalorder %s18, 15
      %p186 = por %p184, %p185
      %p187 = scmp.ne.s32.totalorder %s179, %s182
      %p188 = scmp.eq.s32.totalorder %s18, 0
      %p189 = por %p187, %p188
      %p190 = scmp.ne.s32.totalorder %s179, %s182
      %p191 = scmp.eq.s32.totalorder %s23, 15
      %p192 = por %p190, %p191
      %p193 = scmp.ne.s32.totalorder %s182, %s183
      %p194 = scmp.eq.s32.totalorder %s23, 0
      %p195 = por %p193, %p194
      %p196 = scmp.ne.s32.totalorder %s182, %s183
      %p197 = scmp.eq.s32.totalorder %s24, 15
      %p198 = por %p196, %p197
      %p200 = scmp.ne.s32.totalorder %s183, %s199
      %p201 = scmp.eq.s32.totalorder %s24, 0
      %p202 = por %p200, %p201
      %s204 = sadd.s32 %s203, 1
      %p207 = scmp.eq.s32.totalorder %s18, 15
      %p208 = scmp.ne.s32.totalorder %s203, %s205
      %p209 = scmp.eq.s32.totalorder %s18, 0
      %p210 = por %p208, %p209
      %p211 = scmp.ne.s32.totalorder %s203, %s205
      %p212 = scmp.eq.s32.totalorder %s23, 15
      %p213 = por %p211, %p212
      %p214 = scmp.ne.s32.totalorder %s205, %s206
      %p215 = scmp.eq.s32.totalorder %s23, 0
      %p216 = por %p214, %p215
      %p217 = scmp.ne.s32.totalorder %s205, %s206
      %p218 = scmp.eq.s32.totalorder %s24, 15
      %p219 = por %p217, %p218
      %p221 = scmp.ne.s32.totalorder %s206, %s220
      %p222 = scmp.eq.s32.totalorder %s24, 0
      %p223 = por %p221, %p222
      %s224 = ssub.s32 %s25, %s44
      %s225 = ssub.s32 %s26, %s40
      %s226 = sor.u32 %s224, %s225
      %p227 = scmp.eq.s32.totalorder %s226, 0
      %s229 = sadd.s32 %s228, 1
      %s230 = scalar_select %p227, %s228, %s229
      %p233 = pneg %p227
      %p234 = scmp.eq.s32.totalorder %s18, 15
      %p235 = por %p233, %p234
      %p236 = scmp.ne.s32.totalorder %s228, %s231
      %p237 = scmp.eq.s32.totalorder %s18, 0
      %p238 = por %p236, %p237
      %p239 = scmp.ne.s32.totalorder %s228, %s231
      %p240 = scmp.eq.s32.totalorder %s23, 15
      %p241 = por %p239, %p240
      %p242 = scmp.ne.s32.totalorder %s231, %s232
      %p243 = scmp.eq.s32.totalorder %s23, 0
      %p244 = por %p242, %p243
      %p245 = scmp.ne.s32.totalorder %s231, %s232
      %p246 = scmp.eq.s32.totalorder %s24, 15
      %p247 = por %p245, %p246
      %p249 = scmp.ne.s32.totalorder %s232, %s248
      %p250 = scmp.eq.s32.totalorder %s24, 0
      %p251 = por %p249, %p250
      %s252 = ssub.s32 %s25, %s44
      %s253 = ssub.s32 %s27, %s36
      %s254 = sor.u32 %s252, %s253
      %s255 = ssub.s32 %s26, %s40
      %s256 = sor.u32 %s254, %s255
      %p257 = scmp.eq.s32.totalorder %s256, 0
      %s259 = sadd.s32 %s258, 1
      %s260 = scalar_select %p257, %s258, %s259
      %p263 = pneg %p257
      %p264 = scmp.eq.s32.totalorder %s18, 15
      %p265 = por %p263, %p264
      %p266 = scmp.ne.s32.totalorder %s258, %s261
      %p267 = scmp.eq.s32.totalorder %s18, 0
      %p268 = por %p266, %p267
      %p269 = scmp.ne.s32.totalorder %s258, %s261
      %p270 = scmp.eq.s32.totalorder %s23, 15
      %p271 = por %p269, %p270
      %p272 = scmp.ne.s32.totalorder %s261, %s262
      %p273 = scmp.eq.s32.totalorder %s23, 0
      %p274 = por %p272, %p273
      %p275 = scmp.ne.s32.totalorder %s261, %s262
      %p276 = scmp.eq.s32.totalorder %s24, 15
      %p277 = por %p275, %p276
      %p279 = scmp.ne.s32.totalorder %s262, %s278
      %p280 = scmp.eq.s32.totalorder %s24, 0
      %p281 = por %p279, %p280
      %p282 = scmp.le.s32.totalorder 1, %s18
      %p283 = scmp.lt.s32.totalorder %s18, 17
      %p284 = pnand %p282, %p283
      %p285 = pneg %p284
      // Predicated region
      $region9: #{tpu_custom_call.1} parent=5 // pred_check
        _
      $region10: #{tpu_custom_call.1} parent=5 // pred_check_branch
        %287 = sbr.rel (%p284) target = $region12
      $region11: #{tpu_custom_call.1} parent=5 // pred_region
        %s288 = ssub.s32 %s18, 1
        // Predicated region
        $region13: #{tpu_custom_call.1} parent=11 // pred_check
          %p289 = pneg %p216
        $region14: #{tpu_custom_call.1} parent=11 // pred_check_branch
          %291 = sbr.rel (%p289) target = $region16
        $region15: #{tpu_custom_call.1} parent=11 // pred_region
          _
        $region16: #{tpu_custom_call.1} parent=11 // pred_fallthru
          _
      $region12: #{tpu_custom_call.1} parent=5 // pred_fallthru
        _
      %p292 = scmp.lt.s32.totalorder %s18, 16
      // Predicated region
      $region17: #{tpu_custom_call.1} parent=5 // pred_check
        %p293 = pneg %p292
      $region18: #{tpu_custom_call.1} parent=5 // pred_check_branch
        %295 = sbr.rel (%p293) target = $region20
      $region19: #{tpu_custom_call.1} parent=5 // pred_region
        // Predicated region
        $region21: #{tpu_custom_call.1} parent=19 // pred_check
          %p296 = pneg %p59
        $region22: #{tpu_custom_call.1} parent=19 // pred_check_branch
          %298 = sbr.rel (%p296) target = $region24
        $region23: #{tpu_custom_call.1} parent=19 // pred_region
          %s299 = smul.u32 16, %s26
          %p300 = scmp.lt.s32.totalorder %s25, 1
          %s301 = scalar_select %p300, %s25, 1
          %p302 = scmp.lt.s32.totalorder %s299, 15
          %s303 = scalar_select %p302, %s299, 15
          %s304 = smul.addr %s301, 16
          %s305 = sadd.s32 %s303, %s304
          %s306 = smul.addr %s305, 8
          %s307 = scalar_lea.vmem %s0, %s306
          %s308 = smul.u32 16, %s26
        $region24: #{tpu_custom_call.1} parent=19 // pred_fallthru
          _
        // Predicated region
        $region25: #{tpu_custom_call.1} parent=19 // pred_check
          %p309 = pneg %p85
        $region26: #{tpu_custom_call.1} parent=19 // pred_check_branch
          %311 = sbr.rel (%p309) target = $region28
        $region27: #{tpu_custom_call.1} parent=19 // pred_region
          %p312 = scmp.lt.s32.totalorder %s25, 1
          %s313 = scalar_select %p312, %s25, 1
          %s314 = smul.addr %s313, 16
          %s315 = smul.addr %s314, 8
          %s316 = scalar_lea.vmem %s1, %s315
        $region28: #{tpu_custom_call.1} parent=19 // pred_fallthru
          _
        // Predicated region
        $region29: #{tpu_custom_call.1} parent=19 // pred_check
          %p317 = pneg %p111
        $region30: #{tpu_custom_call.1} parent=19 // pred_check_branch
          %319 = sbr.rel (%p317) target = $region32
        $region31: #{tpu_custom_call.1} parent=19 // pred_region
          %p320 = scmp.lt.s32.totalorder %s27, 7
          %s321 = scalar_select %p320, %s27, 7
          %s322 = smul.addr %s321, 4
          %s323 = smul.addr %s322, 8
          %s324 = scalar_lea.vmem %s2, %s323
        $region32: #{tpu_custom_call.1} parent=19 // pred_fallthru
          _
        // Predicated region
        $region33: #{tpu_custom_call.1} parent=19 // pred_check
          %p325 = pneg %p137
        $region34: #{tpu_custom_call.1} parent=19 // pred_check_branch
          %327 = sbr.rel (%p325) target = $region36
        $region35: #{tpu_custom_call.1} parent=19 // pred_region
          %p328 = scmp.lt.s32.totalorder %s27, 7
          %s329 = scalar_select %p328, %s27, 7
          %s330 = smul.addr %s329, 4
          %s331 = smul.addr %s330, 8
          %s332 = scalar_lea.vmem %s3, %s331
        $region36: #{tpu_custom_call.1} parent=19 // pred_fallthru
          _
        // Predicated region
        $region37: #{tpu_custom_call.1} parent=19 // pred_check
          %p333 = pneg %p163
        $region38: #{tpu_custom_call.1} parent=19 // pred_check_branch
          %335 = sbr.rel (%p333) target = $region40
        $region39: #{tpu_custom_call.1} parent=19 // pred_region
          %p336 = scmp.lt.s32.totalorder %s27, 7
          %s337 = scalar_select %p336, %s27, 7
          %s338 = smul.addr %s337, 4
          %s339 = smul.addr %s338, 8
          %s340 = scalar_lea.vmem %s4, %s339
        $region40: #{tpu_custom_call.1} parent=19 // pred_fallthru
          _
        // Predicated region
        $region41: #{tpu_custom_call.1} parent=19 // pred_check
          %p341 = pneg %p189
        $region42: #{tpu_custom_call.1} parent=19 // pred_check_branch
          %343 = sbr.rel (%p341) target = $region44
        $region43: #{tpu_custom_call.1} parent=19 // pred_region
          %p344 = scmp.lt.s32.totalorder %s27, 7
          %s345 = scalar_select %p344, %s27, 7
          %s346 = smul.addr %s345, 4
          %s347 = scalar_lea.vmem %s5, %s346
        $region44: #{tpu_custom_call.1} parent=19 // pred_fallthru
          _
      $region20: #{tpu_custom_call.1} parent=5 // pred_fallthru
        _
      %p348 = scmp.le.s32.totalorder 1, %s18
      %p349 = scmp.lt.s32.totalorder %s18, 17
      %p350 = pnand %p348, %p349
      %p351 = pneg %p350
      // Predicated region
      $region45: #{tpu_custom_call.1} parent=5 // pred_check
        _
      $region46: #{tpu_custom_call.1} parent=5 // pred_check_branch
        %353 = sbr.rel (%p350) target = $region48
      $region47: #{tpu_custom_call.1} parent=5 // pred_region
        %s354 = ssub.s32 %s18, 1
        %s355 = smul.u32 16, %s29
        %p356 = scmp.lt.s32.totalorder %s28, 1
        %s357 = scalar_select %p356, %s28, 1
        %p358 = scmp.lt.s32.totalorder %s355, 15
        %s359 = scalar_select %p358, %s355, 15
        %s360 = smul.addr %s357, 16
        %s361 = sadd.s32 %s359, %s360
        %s362 = smul.addr %s361, 8
        %s363 = scalar_lea.vmem %s0, %s362
        %p364 = pneg %p65
        %p365 = pneg %p62
        %p366 = scmp.lt.s32.totalorder %s28, 1
        %s367 = scalar_select %p366, %s28, 1
        %s368 = smul.addr %s367, 16
        %s369 = smul.addr %s368, 8
        %s370 = scalar_lea.vmem %s1, %s369
        %p371 = pneg %p91
        %p372 = pneg %p88
        %p373 = scmp.lt.s32.totalorder %s30, 7
        %s374 = scalar_select %p373, %s30, 7
        %s375 = smul.addr %s374, 4
        %s376 = smul.addr %s375, 8
        %s377 = scalar_lea.vmem %s2, %s376
        %p378 = pneg %p117
        %p379 = pneg %p114
        %p380 = scmp.lt.s32.totalorder %s30, 7
        %s381 = scalar_select %p380, %s30, 7
        %s382 = smul.addr %s381, 4
        %s383 = smul.addr %s382, 8
        %s384 = scalar_lea.vmem %s3, %s383
        %p385 = pneg %p143
        %p386 = pneg %p140
        %p387 = scmp.lt.s32.totalorder %s30, 7
        %s388 = scalar_select %p387, %s30, 7
        %s389 = smul.addr %s388, 4
        %s390 = smul.addr %s389, 8
        %s391 = scalar_lea.vmem %s4, %s390
        %p392 = pneg %p169
        %p393 = pneg %p166
        %p394 = scmp.lt.s32.totalorder %s30, 7
        %s395 = scalar_select %p394, %s30, 7
        %s396 = smul.addr %s395, 4
        %s397 = scalar_lea.vmem %s5, %s396
        %p398 = pneg %p195
        %p399 = pneg %p192
        %p400 = pneg %p216
        %p401 = pneg %p213
        %p402 = pneg %p244
        %p403 = pneg %p241
        %s404 = smul.u32 16, %s29
        %p405 = scmp.lt.s32.totalorder %s28, 1
        %s406 = scalar_select %p405, %s28, 1
        %p407 = scmp.lt.s32.totalorder %s404, 15
        %s408 = scalar_select %p407, %s404, 15
        %s409 = smul.addr %s406, 16
        %s410 = sadd.s32 %s408, %s409
        %s411 = smul.addr %s410, 8
        %s412 = scalar_lea.vmem %s7, %s411
        %p413 = pneg %p274
        %p414 = pneg %p271
        %s415 = sand.u32 %s261, 1
        %s416 = scalar_lea.sflag [#allocation4], %s415
        %s417 = sand.u32 %s261, 1
        %s418 = smul.addr %s417, 128
        %s419 = scalar_lea.vmem [#allocation3], %s418
        %s420 = smul.u32 16, %s29
        %p421 = scmp.lt.s32.totalorder %s28, 1
        %s422 = scalar_select %p421, %s28, 1
        %p423 = scmp.lt.s32.totalorder %s420, 15
        %s424 = scalar_select %p423, %s420, 15
        %s425 = smul.addr %s422, 16
        %s426 = sadd.s32 %s424, %s425
        %s427 = smul.addr %s426, 8
        %s428 = scalar_lea.vmem %s0, %s427
        %s429 = smul.u32 16, %s29
        %p430 = scmp.lt.s32.totalorder %s28, 1
        %s431 = scalar_select %p430, %s28, 1
        %s432 = smul.addr %s431, 16
        %s433 = smul.addr %s432, 8
        %s434 = scalar_lea.vmem %s1, %s433
        %p435 = scmp.lt.s32.totalorder %s30, 7
        %s436 = scalar_select %p435, %s30, 7
        %s437 = smul.addr %s436, 4
        %s438 = smul.addr %s437, 8
        %s439 = scalar_lea.vmem %s2, %s438
        %p440 = scmp.lt.s32.totalorder %s30, 7
        %s441 = scalar_select %p440, %s30, 7
        %s442 = smul.addr %s441, 4
        %s443 = smul.addr %s442, 8
        %s444 = scalar_lea.vmem %s3, %s443
        %p445 = scmp.lt.s32.totalorder %s30, 7
        %s446 = scalar_select %p445, %s30, 7
        %s447 = smul.addr %s446, 4
        %s448 = smul.addr %s447, 8
        %s449 = scalar_lea.vmem %s4, %s448
        %p450 = scmp.lt.s32.totalorder %s30, 7
        %s451 = scalar_select %p450, %s30, 7
        %s452 = smul.addr %s451, 4
        %s453 = scalar_lea.vmem %s5, %s452
        %s454 = smul.u32 16, %s29
        %p455 = scmp.lt.s32.totalorder %s28, 1
        %s456 = scalar_select %p455, %s28, 1
        %p457 = scmp.lt.s32.totalorder %s454, 15
        %s458 = scalar_select %p457, %s454, 15
        %s459 = smul.addr %s456, 16
        %s460 = sadd.s32 %s458, %s459
        %s461 = smul.addr %s460, 8
        %s462 = scalar_lea.vmem %s7, %s461
        %s463 = smul.u32 16, %s29
        %s464 = smul.u32 16, %s29
        %v465 = vld [vmem:[%s428] sm:$0xff]
        %v466 = vld [vmem:[%s428 + $0x8] sm:$0xff]
        %v467 = vld [vmem:[%s428 + $0x10] sm:$0xff]
        %v468 = vld [vmem:[%s428 + $0x18] sm:$0xff]
        %v469 = vld [vmem:[%s428 + $0x20] sm:$0xff]
        %v470 = vld [vmem:[%s428 + $0x28] sm:$0xff]
        %v471 = vld [vmem:[%s428 + $0x30] sm:$0xff]
        %v472 = vld [vmem:[%s428 + $0x38] sm:$0xff]
        %v473 = vld [vmem:[%s428 + $0x40] sm:$0xff]
        %v474 = vld [vmem:[%s428 + $0x48] sm:$0xff]
        %v475 = vld [vmem:[%s428 + $0x50] sm:$0xff]
        %v476 = vld [vmem:[%s428 + $0x58] sm:$0xff]
        %v477 = vld [vmem:[%s428 + $0x60] sm:$0xff]
        %v478 = vld [vmem:[%s428 + $0x68] sm:$0xff]
        %v479 = vld [vmem:[%s428 + $0x70] sm:$0xff]
        %v480 = vld [vmem:[%s428 + $0x78] sm:$0xff]
        %v481 = vld [vmem:[%s434] sm:$0xff]
        %v482 = vld [vmem:[%s434 + $0x8] sm:$0xff]
        %v483 = vld [vmem:[%s434 + $0x10] sm:$0xff]
        %v484 = vld [vmem:[%s434 + $0x18] sm:$0xff]
        %v485 = vld [vmem:[%s434 + $0x20] sm:$0xff]
        %v486 = vld [vmem:[%s434 + $0x28] sm:$0xff]
        %v487 = vld [vmem:[%s434 + $0x30] sm:$0xff]
        %v488 = vld [vmem:[%s434 + $0x38] sm:$0xff]
        %v489 = vld [vmem:[%s434 + $0x40] sm:$0xff]
        %v490 = vld [vmem:[%s434 + $0x48] sm:$0xff]
        %v491 = vld [vmem:[%s434 + $0x50] sm:$0xff]
        %v492 = vld [vmem:[%s434 + $0x58] sm:$0xff]
        %v493 = vld [vmem:[%s434 + $0x60] sm:$0xff]
        %v494 = vld [vmem:[%s434 + $0x68] sm:$0xff]
        %v495 = vld [vmem:[%s434 + $0x70] sm:$0xff]
        %v496 = vld [vmem:[%s434 + $0x78] sm:$0xff]
        %v497 = vld [vmem:[%s439] sm:$0xff]
        %v498 = vld [vmem:[%s439 + $0x8] sm:$0xff]
        %v499 = vld [vmem:[%s439 + $0x10] sm:$0xff]
        %v500 = vld [vmem:[%s439 + $0x18] sm:$0xff]
        %vm501 = vcmask 261120
        %v503 = vsel %vm501, %v465, 0
        %v506 = vsel %vm501, %v466, 0
        %v509 = vsel %vm501, %v467, 0
        %v512 = vsel %vm501, %v468, 0
        %v515 = vsel %vm501, %v469, 0
        %v518 = vsel %vm501, %v470, 0
        %v521 = vsel %vm501, %v471, 0
        %v524 = vsel %vm501, %v472, 0
        %v527 = vsel %vm501, %v473, 0
        %v530 = vsel %vm501, %v474, 0
        %v533 = vsel %vm501, %v475, 0
        %v536 = vsel %vm501, %v476, 0
        %v539 = vsel %vm501, %v477, 0
        %v542 = vsel %vm501, %v478, 0
        %v545 = vsel %vm501, %v479, 0
        %v548 = vsel %vm501, %v480, 0
        %550 = vmatprep.subr.mxu0 0.0
        %551 = vmatpush1.msra.mxu0 %v497
        %552 = vmatprep.subr.mxu0 0.0
        %553 = vmatpush1.msra.mxu0 %v498
        %554 = vmatprep.subr.mxu0 0.0
        %555 = vmatpush1.msra.mxu0 %v499
        %556 = vmatprep.subr.mxu0 0.0
        %557 = vmatpush1.msra.mxu0 %v500
        %558 = vmatprep.subr.mxu0 0.0
        %559 = vmatpush1.msra.mxu0 0.0
        %560 = vmatprep.subr.mxu0 0.0
        %561 = vmatpush1.msra.mxu0 0.0
        %562 = vmatprep.subr.mxu0 0.0
        %563 = vmatpush1.msra.mxu0 0.0
        %564 = vmatprep.subr.mxu0 0.0
        %565 = vmatpush1.msra.mxu0 0.0
        %566 = vmatprep.subr.mxu0 0.0
        %567 = vmatpush1.msra.mxu0 0.0
        %568 = vmatprep.subr.mxu0 0.0
        %569 = vmatpush1.msra.mxu0 0.0
        %570 = vmatprep.subr.mxu0 0.0
        %571 = vmatpush1.msra.mxu0 0.0
        %572 = vmatprep.subr.mxu0 0.0
        %573 = vmatpush1.msra.mxu0 0.0
        %574 = vmatprep.subr.mxu0 0.0
        %575 = vmatpush1.msra.mxu0 0.0
        %576 = vmatprep.subr.mxu0 0.0
        %577 = vmatpush1.msra.mxu0 0.0
        %578 = vmatprep.subr.mxu0 0.0
        %579 = vmatpush1.msra.mxu0 0.0
        %580 = vmatprep.subr.mxu0 0.0
        %581 = vmatpush1.msra.mxu0 0.0
        %582 = vmatprep.subr.mxu0 0.0
        %583 = vmatpush1.msra.mxu0 0.0
        %584 = vmatprep.subr.mxu0 0.0
        %585 = vmatpush1.msra.mxu0 0.0
        %586 = vmatprep.subr.mxu0 0.0
        %587 = vmatpush1.msra.mxu0 0.0
        %588 = vmatprep.subr.mxu0 0.0
        %589 = vmatpush1.msra.mxu0 0.0
        %590 = vmatprep.subr.mxu0 0.0
        %591 = vmatpush1.msra.mxu0 0.0
        %592 = vmatprep.subr.mxu0 0.0
        %593 = vmatpush1.msra.mxu0 0.0
        %594 = vmatprep.subr.mxu0 0.0
        %595 = vmatpush1.msra.mxu0 0.0
        %596 = vmatprep.subr.mxu0 0.0
        %597 = vmatpush1.msra.mxu0 0.0
        %598 = vmatprep.subr.mxu0 0.0
        %599 = vmatpush1.msra.mxu0 0.0
        %600 = vmatprep.subr.mxu0 0.0
        %601 = vmatpush1.msra.mxu0 0.0
        %602 = vmatprep.subr.mxu0 0.0
        %603 = vmatpush1.msra.mxu0 0.0
        %604 = vmatprep.subr.mxu0 0.0
        %605 = vmatpush1.msra.mxu0 0.0
        %606 = vmatprep.subr.mxu0 0.0
        %607 = vmatpush1.msra.mxu0 0.0
        %608 = vmatprep.subr.mxu0 0.0
        %609 = vmatpush1.msra.mxu0 0.0
        %610 = vmatprep.subr.mxu0 0.0
        %611 = vmatpush1.msra.mxu0 0.0
        %612 = vmatprep.subr.mxu0 0.0
        %613 = vmatpush1.msra.mxu0 0.0
        %614 = vmatprep.mubr.f32.mxu0 0.0
        %615 = vmatmul.mubr.f32.gmra.mrb[0].mxu0 %v503
        %v616 = vpop.f32.mrb[0].mxu0
        %v617 = vadd.f32 0.0, %v616
        %v618 = vpop.f32.mrb[0].mxu0
        %619 = vmatprep.mubr.f32.mxu0 0.0
        %620 = vmatmul.mubr.f32.gmra.mrb[0].mxu0 %v506
        %v621 = vpop.f32.mrb[0].mxu0
        %v622 = vadd.f32 0.0, %v621
        %v623 = vpop.f32.mrb[0].mxu0
        %624 = vmatprep.mubr.f32.mxu0 0.0
        %625 = vmatmul.mubr.f32.gmra.mrb[0].mxu0 %v509
        %v626 = vpop.f32.mrb[0].mxu0
        %v627 = vadd.f32 0.0, %v626
        %v628 = vpop.f32.mrb[0].mxu0
        %629 = vmatprep.mubr.f32.mxu0 0.0
        %630 = vmatmul.mubr.f32.gmra.mrb[0].mxu0 %v512
        %v631 = vpop.f32.mrb[0].mxu0
        %v632 = vadd.f32 0.0, %v631
        %v633 = vpop.f32.mrb[0].mxu0
        %634 = vmatprep.mubr.f32.mxu0 0.0
        %635 = vmatmul.mubr.f32.gmra.mrb[0].mxu0 %v515
        %v636 = vpop.f32.mrb[0].mxu0
        %v637 = vadd.f32 0.0, %v636
        %v638 = vpop.f32.mrb[0].mxu0
        %639 = vmatprep.mubr.f32.mxu0 0.0
        %640 = vmatmul.mubr.f32.gmra.mrb[0].mxu0 %v518
        %v641 = vpop.f32.mrb[0].mxu0
        %v642 = vadd.f32 0.0, %v641
        %v643 = vpop.f32.mrb[0].mxu0
        %644 = vmatprep.mubr.f32.mxu0 0.0
        %645 = vmatmul.mubr.f32.gmra.mrb[0].mxu0 %v521
        %v646 = vpop.f32.mrb[0].mxu0
        %v647 = vadd.f32 0.0, %v646
        %v648 = vpop.f32.mrb[0].mxu0
        %649 = vmatprep.mubr.f32.mxu0 0.0
        %650 = vmatmul.mubr.f32.gmra.mrb[0].mxu0 %v524
        %v651 = vpop.f32.mrb[0].mxu0
        %v652 = vadd.f32 0.0, %v651
        %v653 = vpop.f32.mrb[0].mxu0
        %654 = vmatprep.mubr.f32.mxu0 0.0
        %655 = vmatmul.mubr.f32.gmra.mrb[0].mxu0 %v527
        %v656 = vpop.f32.mrb[0].mxu0
        %v657 = vadd.f32 0.0, %v656
        %v658 = vpop.f32.mrb[0].mxu0
        %659 = vmatprep.mubr.f32.mxu0 0.0
        %660 = vmatmul.mubr.f32.gmra.mrb[0].mxu0 %v530
        %v661 = vpop.f32.mrb[0].mxu0
        %v662 = vadd.f32 0.0, %v661
        %v663 = vpop.f32.mrb[0].mxu0
        %664 = vmatprep.mubr.f32.mxu0 0.0
        %665 = vmatmul.mubr.f32.gmra.mrb[0].mxu0 %v533
        %v666 = vpop.f32.mrb[0].mxu0
        %v667 = vadd.f32 0.0, %v666
        %v668 = vpop.f32.mrb[0].mxu0
        %669 = vmatprep.mubr.f32.mxu0 0.0
        %670 = vmatmul.mubr.f32.gmra.mrb[0].mxu0 %v536
        %v671 = vpop.f32.mrb[0].mxu0
        %v672 = vadd.f32 0.0, %v671
        %v673 = vpop.f32.mrb[0].mxu0
        %674 = vmatprep.mubr.f32.mxu0 0.0
        %675 = vmatmul.mubr.f32.gmra.mrb[0].mxu0 %v539
        %v676 = vpop.f32.mrb[0].mxu0
        %v677 = vadd.f32 0.0, %v676
        %v678 = vpop.f32.mrb[0].mxu0
        %679 = vmatprep.mubr.f32.mxu0 0.0
        %680 = vmatmul.mubr.f32.gmra.mrb[0].mxu0 %v542
        %v681 = vpop.f32.mrb[0].mxu0
        %v682 = vadd.f32 0.0, %v681
        %v683 = vpop.f32.mrb[0].mxu0
        %684 = vmatprep.mubr.f32.mxu0 0.0
        %685 = vmatmul.mubr.f32.gmra.mrb[0].mxu0 %v545
        %v686 = vpop.f32.mrb[0].mxu0
        %v687 = vadd.f32 0.0, %v686
        %v688 = vpop.f32.mrb[0].mxu0
        %689 = vmatprep.mubr.f32.mxu0 0.0
        %690 = vmatmul.mubr.f32.gmra.mrb[0].mxu0 %v548
        %v691 = vpop.f32.mrb[0].mxu0
        %v692 = vadd.f32 0.0, %v691
        %v693 = vpop.f32.mrb[0].mxu0
        %694 = vdwg.mxu0
        %v695 = vld [vmem:[%s444] sm:$0xff]
        %v696 = vld [vmem:[%s444 + $0x8] sm:$0xff]
        %v697 = vld [vmem:[%s444 + $0x10] sm:$0xff]
        %v698 = vld [vmem:[%s444 + $0x18] sm:$0xff]
        %v700 = vsel %vm501, %v481, 0
        %v703 = vsel %vm501, %v482, 0
        %v706 = vsel %vm501, %v483, 0
        %v709 = vsel %vm501, %v484, 0
        %v712 = vsel %vm501, %v485, 0
        %v715 = vsel %vm501, %v486, 0
        %v718 = vsel %vm501, %v487, 0
        %v721 = vsel %vm501, %v488, 0
        %v724 = vsel %vm501, %v489, 0
        %v727 = vsel %vm501, %v490, 0
        %v730 = vsel %vm501, %v491, 0
        %v733 = vsel %vm501, %v492, 0
        %v736 = vsel %vm501, %v493, 0
        %v739 = vsel %vm501, %v494, 0
        %v742 = vsel %vm501, %v495, 0
        %v745 = vsel %vm501, %v496, 0
        %747 = vmatprep.subr.mxu0 0.0
        %748 = vmatpush1.msra.mxu0 %v695
        %749 = vmatprep.subr.mxu0 0.0
        %750 = vmatpush1.msra.mxu0 %v696
        %751 = vmatprep.subr.mxu0 0.0
        %752 = vmatpush1.msra.mxu0 %v697
        %753 = vmatprep.subr.mxu0 0.0
        %754 = vmatpush1.msra.mxu0 %v698
        %755 = vmatprep.subr.mxu0 0.0
        %756 = vmatpush1.msra.mxu0 0.0
        %757 = vmatprep.subr.mxu0 0.0
        %758 = vmatpush1.msra.mxu0 0.0
        %759 = vmatprep.subr.mxu0 0.0
        %760 = vmatpush1.msra.mxu0 0.0
        %761 = vmatprep.subr.mxu0 0.0
        %762 = vmatpush1.msra.mxu0 0.0
        %763 = vmatprep.subr.mxu0 0.0
        %764 = vmatpush1.msra.mxu0 0.0
        %765 = vmatprep.subr.mxu0 0.0
        %766 = vmatpush1.msra.mxu0 0.0
        %767 = vmatprep.subr.mxu0 0.0
        %768 = vmatpush1.msra.mxu0 0.0
        %769 = vmatprep.subr.mxu0 0.0
        %770 = vmatpush1.msra.mxu0 0.0
        %771 = vmatprep.subr.mxu0 0.0
        %772 = vmatpush1.msra.mxu0 0.0
        %773 = vmatprep.subr.mxu0 0.0
        %774 = vmatpush1.msra.mxu0 0.0
        %775 = vmatprep.subr.mxu0 0.0
        %776 = vmatpush1.msra.mxu0 0.0
        %777 = vmatprep.subr.mxu0 0.0
        %778 = vmatpush1.msra.mxu0 0.0
        %779 = vmatprep.subr.mxu0 0.0
        %780 = vmatpush1.msra.mxu0 0.0
        %781 = vmatprep.subr.mxu0 0.0
        %782 = vmatpush1.msra.mxu0 0.0
        %783 = vmatprep.subr.mxu0 0.0
        %784 = vmatpush1.msra.mxu0 0.0
        %785 = vmatprep.subr.mxu0 0.0
        %786 = vmatpush1.msra.mxu0 0.0
        %787 = vmatprep.subr.mxu0 0.0
        %788 = vmatpush1.msra.mxu0 0.0
        %789 = vmatprep.subr.mxu0 0.0
        %790 = vmatpush1.msra.mxu0 0.0
        %791 = vmatprep.subr.mxu0 0.0
        %792 = vmatpush1.msra.mxu0 0.0
        %793 = vmatprep.subr.mxu0 0.0
        %794 = vmatpush1.msra.mxu0 0.0
        %795 = vmatprep.subr.mxu0 0.0
        %796 = vmatpush1.msra.mxu0 0.0
        %797 = vmatprep.subr.mxu0 0.0
        %798 = vmatpush1.msra.mxu0 0.0
        %799 = vmatprep.subr.mxu0 0.0
        %800 = vmatpush1.msra.mxu0 0.0
        %801 = vmatprep.subr.mxu0 0.0
        %802 = vmatpush1.msra.mxu0 0.0
        %803 = vmatprep.subr.mxu0 0.0
        %804 = vmatpush1.msra.mxu0 0.0
        %805 = vmatprep.subr.mxu0 0.0
        %806 = vmatpush1.msra.mxu0 0.0
        %807 = vmatprep.subr.mxu0 0.0
        %808 = vmatpush1.msra.mxu0 0.0
        %809 = vmatprep.subr.mxu0 0.0
        %810 = vmatpush1.msra.mxu0 0.0
        %811 = vmatprep.mubr.f32.mxu0 0.0
        %812 = vmatmul.mubr.f32.gmra.mrb[0].mxu0 %v700
        %v813 = vpop.f32.mrb[0].mxu0
        %v814 = vadd.f32 0.0, %v813
        %v815 = vpop.f32.mrb[0].mxu0
        %816 = vmatprep.mubr.f32.mxu0 0.0
        %817 = vmatmul.mubr.f32.gmra.mrb[0].mxu0 %v703
        %v818 = vpop.f32.mrb[0].mxu0
        %v819 = vadd.f32 0.0, %v818
        %v820 = vpop.f32.mrb[0].mxu0
        %821 = vmatprep.mubr.f32.mxu0 0.0
        %822 = vmatmul.mubr.f32.gmra.mrb[0].mxu0 %v706
        %v823 = vpop.f32.mrb[0].mxu0
        %v824 = vadd.f32 0.0, %v823
        %v825 = vpop.f32.mrb[0].mxu0
        %826 = vmatprep.mubr.f32.mxu0 0.0
        %827 = vmatmul.mubr.f32.gmra.mrb[0].mxu0 %v709
        %v828 = vpop.f32.mrb[0].mxu0
        %v829 = vadd.f32 0.0, %v828
        %v830 = vpop.f32.mrb[0].mxu0
        %831 = vmatprep.mubr.f32.mxu0 0.0
        %832 = vmatmul.mubr.f32.gmra.mrb[0].mxu0 %v712
        %v833 = vpop.f32.mrb[0].mxu0
        %v834 = vadd.f32 0.0, %v833
        %v835 = vpop.f32.mrb[0].mxu0
        %836 = vmatprep.mubr.f32.mxu0 0.0
        %837 = vmatmul.mubr.f32.gmra.mrb[0].mxu0 %v715
        %v838 = vpop.f32.mrb[0].mxu0
        %v839 = vadd.f32 0.0, %v838
        %v840 = vpop.f32.mrb[0].mxu0
        %841 = vmatprep.mubr.f32.mxu0 0.0
        %842 = vmatmul.mubr.f32.gmra.mrb[0].mxu0 %v718
        %v843 = vpop.f32.mrb[0].mxu0
        %v844 = vadd.f32 0.0, %v843
        %v845 = vpop.f32.mrb[0].mxu0
        %846 = vmatprep.mubr.f32.mxu0 0.0
        %847 = vmatmul.mubr.f32.gmra.mrb[0].mxu0 %v721
        %v848 = vpop.f32.mrb[0].mxu0
        %v849 = vadd.f32 0.0, %v848
        %v850 = vpop.f32.mrb[0].mxu0
        %851 = vmatprep.mubr.f32.mxu0 0.0
        %852 = vmatmul.mubr.f32.gmra.mrb[0].mxu0 %v724
        %v853 = vpop.f32.mrb[0].mxu0
        %v854 = vadd.f32 0.0, %v853
        %v855 = vpop.f32.mrb[0].mxu0
        %856 = vmatprep.mubr.f32.mxu0 0.0
        %857 = vmatmul.mubr.f32.gmra.mrb[0].mxu0 %v727
        %v858 = vpop.f32.mrb[0].mxu0
        %v859 = vadd.f32 0.0, %v858
        %v860 = vpop.f32.mrb[0].mxu0
        %861 = vmatprep.mubr.f32.mxu0 0.0
        %862 = vmatmul.mubr.f32.gmra.mrb[0].mxu0 %v730
        %v863 = vpop.f32.mrb[0].mxu0
        %v864 = vadd.f32 0.0, %v863
        %v865 = vpop.f32.mrb[0].mxu0
        %866 = vmatprep.mubr.f32.mxu0 0.0
        %867 = vmatmul.mubr.f32.gmra.mrb[0].mxu0 %v733
        %v868 = vpop.f32.mrb[0].mxu0
        %v869 = vadd.f32 0.0, %v868
        %v870 = vpop.f32.mrb[0].mxu0
        %871 = vmatprep.mubr.f32.mxu0 0.0
        %872 = vmatmul.mubr.f32.gmra.mrb[0].mxu0 %v736
        %v873 = vpop.f32.mrb[0].mxu0
        %v874 = vadd.f32 0.0, %v873
        %v875 = vpop.f32.mrb[0].mxu0
        %876 = vmatprep.mubr.f32.mxu0 0.0
        %877 = vmatmul.mubr.f32.gmra.mrb[0].mxu0 %v739
        %v878 = vpop.f32.mrb[0].mxu0
        %v879 = vadd.f32 0.0, %v878
        %v880 = vpop.f32.mrb[0].mxu0
        %881 = vmatprep.mubr.f32.mxu0 0.0
        %882 = vmatmul.mubr.f32.gmra.mrb[0].mxu0 %v742
        %v883 = vpop.f32.mrb[0].mxu0
        %v884 = vadd.f32 0.0, %v883
        %v885 = vpop.f32.mrb[0].mxu0
        %886 = vmatprep.mubr.f32.mxu0 0.0
        %887 = vmatmul.mubr.f32.gmra.mrb[0].mxu0 %v745
        %v888 = vpop.f32.mrb[0].mxu0
        %v889 = vadd.f32 0.0, %v888
        %v890 = vpop.f32.mrb[0].mxu0
        %891 = vdwg.mxu0
        %v892 = vld [vmem:[%s449] sm:$0xff]
        %v893 = vld [vmem:[%s449 + $0x8] sm:$0xff]
        %v894 = vld [vmem:[%s449 + $0x10] sm:$0xff]
        %v895 = vld [vmem:[%s449 + $0x18] sm:$0xff]
        %896 = vmatprep.subr.mxu0 0.0
        %897 = vmatpush1.msra.mxu0 %v892
        %898 = vmatprep.subr.mxu0 0.0
        %899 = vmatpush1.msra.mxu0 %v893
        %900 = vmatprep.subr.mxu0 0.0
        %901 = vmatpush1.msra.mxu0 %v894
        %902 = vmatprep.subr.mxu0 0.0
        %903 = vmatpush1.msra.mxu0 %v895
        %904 = vmatprep.subr.mxu0 0.0
        %905 = vmatpush1.msra.mxu0 0.0
        %906 = vmatprep.subr.mxu0 0.0
        %907 = vmatpush1.msra.mxu0 0.0
        %908 = vmatprep.subr.mxu0 0.0
        %909 = vmatpush1.msra.mxu0 0.0
        %910 = vmatprep.subr.mxu0 0.0
        %911 = vmatpush1.msra.mxu0 0.0
        %912 = vmatprep.subr.mxu0 0.0
        %913 = vmatpush1.msra.mxu0 0.0
        %914 = vmatprep.subr.mxu0 0.0
        %915 = vmatpush1.msra.mxu0 0.0
        %916 = vmatprep.subr.mxu0 0.0
        %917 = vmatpush1.msra.mxu0 0.0
        %918 = vmatprep.subr.mxu0 0.0
        %919 = vmatpush1.msra.mxu0 0.0
        %920 = vmatprep.subr.mxu0 0.0
        %921 = vmatpush1.msra.mxu0 0.0
        %922 = vmatprep.subr.mxu0 0.0
        %923 = vmatpush1.msra.mxu0 0.0
        %924 = vmatprep.subr.mxu0 0.0
        %925 = vmatpush1.msra.mxu0 0.0
        %926 = vmatprep.subr.mxu0 0.0
        %927 = vmatpush1.msra.mxu0 0.0
        %928 = vmatprep.subr.mxu0 0.0
        %929 = vmatpush1.msra.mxu0 0.0
        %930 = vmatprep.subr.mxu0 0.0
        %931 = vmatpush1.msra.mxu0 0.0
        %932 = vmatprep.subr.mxu0 0.0
        %933 = vmatpush1.msra.mxu0 0.0
        %934 = vmatprep.subr.mxu0 0.0
        %935 = vmatpush1.msra.mxu0 0.0
        %936 = vmatprep.subr.mxu0 0.0
        %937 = vmatpush1.msra.mxu0 0.0
        %938 = vmatprep.subr.mxu0 0.0
        %939 = vmatpush1.msra.mxu0 0.0
        %940 = vmatprep.subr.mxu0 0.0
        %941 = vmatpush1.msra.mxu0 0.0
        %942 = vmatprep.subr.mxu0 0.0
        %943 = vmatpush1.msra.mxu0 0.0
        %944 = vmatprep.subr.mxu0 0.0
        %945 = vmatpush1.msra.mxu0 0.0
        %946 = vmatprep.subr.mxu0 0.0
        %947 = vmatpush1.msra.mxu0 0.0
        %948 = vmatprep.subr.mxu0 0.0
        %949 = vmatpush1.msra.mxu0 0.0
        %950 = vmatprep.subr.mxu0 0.0
        %951 = vmatpush1.msra.mxu0 0.0
        %952 = vmatprep.subr.mxu0 0.0
        %953 = vmatpush1.msra.mxu0 0.0
        %954 = vmatprep.subr.mxu0 0.0
        %955 = vmatpush1.msra.mxu0 0.0
        %956 = vmatprep.subr.mxu0 0.0
        %957 = vmatpush1.msra.mxu0 0.0
        %958 = vmatprep.subr.mxu0 0.0
        %959 = vmatpush1.msra.mxu0 0.0
        %960 = vmatprep.mubr.f32.mxu0 0.0
        %961 = vmatmul.mubr.f32.gmra.mrb[0].mxu0 %v700
        %v962 = vpop.f32.mrb[0].mxu0
        %v963 = vadd.f32 0.0, %v962
        %v964 = vpop.f32.mrb[0].mxu0
        %965 = vmatprep.mubr.f32.mxu0 0.0
        %966 = vmatmul.mubr.f32.gmra.mrb[0].mxu0 %v703
        %v967 = vpop.f32.mrb[0].mxu0
        %v968 = vadd.f32 0.0, %v967
        %v969 = vpop.f32.mrb[0].mxu0
        %970 = vmatprep.mubr.f32.mxu0 0.0
        %971 = vmatmul.mubr.f32.gmra.mrb[0].mxu0 %v706
        %v972 = vpop.f32.mrb[0].mxu0
        %v973 = vadd.f32 0.0, %v972
        %v974 = vpop.f32.mrb[0].mxu0
        %975 = vmatprep.mubr.f32.mxu0 0.0
        %976 = vmatmul.mubr.f32.gmra.mrb[0].mxu0 %v709
        %v977 = vpop.f32.mrb[0].mxu0
        %v978 = vadd.f32 0.0, %v977
        %v979 = vpop.f32.mrb[0].mxu0
        %980 = vmatprep.mubr.f32.mxu0 0.0
        %981 = vmatmul.mubr.f32.gmra.mrb[0].mxu0 %v712
        %v982 = vpop.f32.mrb[0].mxu0
        %v983 = vadd.f32 0.0, %v982
        %v984 = vpop.f32.mrb[0].mxu0
        %985 = vmatprep.mubr.f32.mxu0 0.0
        %986 = vmatmul.mubr.f32.gmra.mrb[0].mxu0 %v715
        %v987 = vpop.f32.mrb[0].mxu0
        %v988 = vadd.f32 0.0, %v987
        %v989 = vpop.f32.mrb[0].mxu0
        %990 = vmatprep.mubr.f32.mxu0 0.0
        %991 = vmatmul.mubr.f32.gmra.mrb[0].mxu0 %v718
        %v992 = vpop.f32.mrb[0].mxu0
        %v993 = vadd.f32 0.0, %v992
        %v994 = vpop.f32.mrb[0].mxu0
        %995 = vmatprep.mubr.f32.mxu0 0.0
        %996 = vmatmul.mubr.f32.gmra.mrb[0].mxu0 %v721
        %v997 = vpop.f32.mrb[0].mxu0
        %v998 = vadd.f32 0.0, %v997
        %v999 = vpop.f32.mrb[0].mxu0
        %1000 = vmatprep.mubr.f32.mxu0 0.0
        %1001 = vmatmul.mubr.f32.gmra.mrb[0].mxu0 %v724
        %v1002 = vpop.f32.mrb[0].mxu0
        %v1003 = vadd.f32 0.0, %v1002
        %v1004 = vpop.f32.mrb[0].mxu0
        %1005 = vmatprep.mubr.f32.mxu0 0.0
        %1006 = vmatmul.mubr.f32.gmra.mrb[0].mxu0 %v727
        %v1007 = vpop.f32.mrb[0].mxu0
        %v1008 = vadd.f32 0.0, %v1007
        %v1009 = vpop.f32.mrb[0].mxu0
        %1010 = vmatprep.mubr.f32.mxu0 0.0
        %1011 = vmatmul.mubr.f32.gmra.mrb[0].mxu0 %v730
        %v1012 = vpop.f32.mrb[0].mxu0
        %v1013 = vadd.f32 0.0, %v1012
        %v1014 = vpop.f32.mrb[0].mxu0
        %1015 = vmatprep.mubr.f32.mxu0 0.0
        %1016 = vmatmul.mubr.f32.gmra.mrb[0].mxu0 %v733
        %v1017 = vpop.f32.mrb[0].mxu0
        %v1018 = vadd.f32 0.0, %v1017
        %v1019 = vpop.f32.mrb[0].mxu0
        %1020 = vmatprep.mubr.f32.mxu0 0.0
        %1021 = vmatmul.mubr.f32.gmra.mrb[0].mxu0 %v736
        %v1022 = vpop.f32.mrb[0].mxu0
        %v1023 = vadd.f32 0.0, %v1022
        %v1024 = vpop.f32.mrb[0].mxu0
        %1025 = vmatprep.mubr.f32.mxu0 0.0
        %1026 = vmatmul.mubr.f32.gmra.mrb[0].mxu0 %v739
        %v1027 = vpop.f32.mrb[0].mxu0
        %v1028 = vadd.f32 0.0, %v1027
        %v1029 = vpop.f32.mrb[0].mxu0
        %1030 = vmatprep.mubr.f32.mxu0 0.0
        %1031 = vmatmul.mubr.f32.gmra.mrb[0].mxu0 %v742
        %v1032 = vpop.f32.mrb[0].mxu0
        %v1033 = vadd.f32 0.0, %v1032
        %v1034 = vpop.f32.mrb[0].mxu0
        %1035 = vmatprep.mubr.f32.mxu0 0.0
        %1036 = vmatmul.mubr.f32.gmra.mrb[0].mxu0 %v745
        %v1037 = vpop.f32.mrb[0].mxu0
        %v1038 = vadd.f32 0.0, %v1037
        %v1039 = vpop.f32.mrb[0].mxu0
        %1040 = vdwg.mxu0
        %vm1041 = vcmask 31744
        %v1043 = vsel %vm1041, %v617, 0
        %v1046 = vsel %vm1041, %v622, 0
        %v1049 = vsel %vm1041, %v627, 0
        %v1052 = vsel %vm1041, %v632, 0
        %v1055 = vsel %vm1041, %v637, 0
        %v1058 = vsel %vm1041, %v642, 0
        %v1061 = vsel %vm1041, %v647, 0
        %v1064 = vsel %vm1041, %v652, 0
        %v1067 = vsel %vm1041, %v657, 0
        %v1070 = vsel %vm1041, %v662, 0
        %v1073 = vsel %vm1041, %v667, 0
        %v1076 = vsel %vm1041, %v672, 0
        %v1079 = vsel %vm1041, %v677, 0
        %v1082 = vsel %vm1041, %v682, 0
        %v1085 = vsel %vm1041, %v687, 0
        %v1088 = vsel %vm1041, %v692, 0
        %v1091 = vsel %vm1041, %v814, 0
        %v1094 = vsel %vm1041, %v819, 0
        %v1097 = vsel %vm1041, %v824, 0
        %v1100 = vsel %vm1041, %v829, 0
        %v1103 = vsel %vm1041, %v834, 0
        %v1106 = vsel %vm1041, %v839, 0
        %v1109 = vsel %vm1041, %v844, 0
        %v1112 = vsel %vm1041, %v849, 0
        %v1115 = vsel %vm1041, %v854, 0
        %v1118 = vsel %vm1041, %v859, 0
        %v1121 = vsel %vm1041, %v864, 0
        %v1124 = vsel %vm1041, %v869, 0
        %v1127 = vsel %vm1041, %v874, 0
        %v1130 = vsel %vm1041, %v879, 0
        %v1133 = vsel %vm1041, %v884, 0
        %v1136 = vsel %vm1041, %v889, 0
        %1138 = vmatprep.subr.mxu0 0.0
        %1139 = vmatpush1.xpose.msra.mxu0 %v1091
        %1140 = vmatprep.subr.mxu0 0.0
        %1141 = vmatpush1.xpose.msra.mxu0 %v1094
        %1142 = vmatprep.subr.mxu0 0.0
        %1143 = vmatpush1.xpose.msra.mxu0 %v1097
        %1144 = vmatprep.subr.mxu0 0.0
        %1145 = vmatpush1.xpose.msra.mxu0 %v1100
        %1146 = vmatprep.subr.mxu0 0.0
        %1147 = vmatpush1.xpose.msra.mxu0 %v1103
        %1148 = vmatprep.subr.mxu0 0.0
        %1149 = vmatpush1.xpose.msra.mxu0 %v1106
        %1150 = vmatprep.subr.mxu0 0.0
        %1151 = vmatpush1.xpose.msra.mxu0 %v1109
        %1152 = vmatprep.subr.mxu0 0.0
        %1153 = vmatpush1.xpose.msra.mxu0 %v1112
        %1154 = vmatprep.subr.mxu0 0.0
        %1155 = vmatpush1.xpose.msra.mxu0 %v1115
        %1156 = vmatprep.subr.mxu0 0.0
        %1157 = vmatpush1.xpose.msra.mxu0 %v1118
        %1158 = vmatprep.subr.mxu0 0.0
        %1159 = vmatpush1.xpose.msra.mxu0 %v1121
        %1160 = vmatprep.subr.mxu0 0.0
        %1161 = vmatpush1.xpose.msra.mxu0 %v1124
        %1162 = vmatprep.subr.mxu0 0.0
        %1163 = vmatpush1.xpose.msra.mxu0 %v1127
        %1164 = vmatprep.subr.mxu0 0.0
        %1165 = vmatpush1.xpose.msra.mxu0 %v1130
        %1166 = vmatprep.subr.mxu0 0.0
        %1167 = vmatpush1.xpose.msra.mxu0 %v1133
        %1168 = vmatprep.subr.mxu0 0.0
        %1169 = vmatpush1.xpose.msra.mxu0 %v1136
        %1170 = vmatprep.subr.mxu0 0.0
        %1171 = vmatpush1.xpose.msra.mxu0 0.0
        %1172 = vmatprep.subr.mxu0 0.0
        %1173 = vmatpush1.xpose.msra.mxu0 0.0
        %1174 = vmatprep.subr.mxu0 0.0
        %1175 = vmatpush1.xpose.msra.mxu0 0.0
        %1176 = vmatprep.subr.mxu0 0.0
        %1177 = vmatpush1.xpose.msra.mxu0 0.0
        %1178 = vmatprep.subr.mxu0 0.0
        %1179 = vmatpush1.xpose.msra.mxu0 0.0
        %1180 = vmatprep.subr.mxu0 0.0
        %1181 = vmatpush1.xpose.msra.mxu0 0.0
        %1182 = vmatprep.subr.mxu0 0.0
        %1183 = vmatpush1.xpose.msra.mxu0 0.0
        %1184 = vmatprep.subr.mxu0 0.0
        %1185 = vmatpush1.xpose.msra.mxu0 0.0
        %1186 = vmatprep.subr.mxu0 0.0
        %1187 = vmatpush1.xpose.msra.mxu0 0.0
        %1188 = vmatprep.subr.mxu0 0.0
        %1189 = vmatpush1.xpose.msra.mxu0 0.0
        %1190 = vmatprep.subr.mxu0 0.0
        %1191 = vmatpush1.xpose.msra.mxu0 0.0
        %1192 = vmatprep.subr.mxu0 0.0
        %1193 = vmatpush1.xpose.msra.mxu0 0.0
        %1194 = vmatprep.subr.mxu0 0.0
        %1195 = vmatpush1.xpose.msra.mxu0 0.0
        %1196 = vmatprep.subr.mxu0 0.0
        %1197 = vmatpush1.xpose.msra.mxu0 0.0
        %1198 = vmatprep.subr.mxu0 0.0
        %1199 = vmatpush1.xpose.msra.mxu0 0.0
        %1200 = vmatprep.subr.mxu0 0.0
        %1201 = vmatpush1.xpose.msra.mxu0 0.0
        %1202 = vmatprep.mubr.f32.mxu0 0.0
        %1203 = vmatmul.mubr.f32.gmra.mrb[0].mxu0 %v1043
        %v1204 = vpop.f32.mrb[0].mxu0
        %v1205 = vadd.f32 0.0, %v1204
        %v1206 = vpop.f32.mrb[0].mxu0
        %1207 = vmatprep.mubr.f32.mxu0 0.0
        %1208 = vmatmul.mubr.f32.gmra.mrb[0].mxu0 %v1046
        %v1209 = vpop.f32.mrb[0].mxu0
        %v1210 = vadd.f32 0.0, %v1209
        %v1211 = vpop.f32.mrb[0].mxu0
        %1212 = vmatprep.mubr.f32.mxu0 0.0
        %1213 = vmatmul.mubr.f32.gmra.mrb[0].mxu0 %v1049
        %v1214 = vpop.f32.mrb[0].mxu0
        %v1215 = vadd.f32 0.0, %v1214
        %v1216 = vpop.f32.mrb[0].mxu0
        %1217 = vmatprep.mubr.f32.mxu0 0.0
        %1218 = vmatmul.mubr.f32.gmra.mrb[0].mxu0 %v1052
        %v1219 = vpop.f32.mrb[0].mxu0
        %v1220 = vadd.f32 0.0, %v1219
        %v1221 = vpop.f32.mrb[0].mxu0
        %1222 = vmatprep.mubr.f32.mxu0 0.0
        %1223 = vmatmul.mubr.f32.gmra.mrb[0].mxu0 %v1055
        %v1224 = vpop.f32.mrb[0].mxu0
        %v1225 = vadd.f32 0.0, %v1224
        %v1226 = vpop.f32.mrb[0].mxu0
        %1227 = vmatprep.mubr.f32.mxu0 0.0
        %1228 = vmatmul.mubr.f32.gmra.mrb[0].mxu0 %v1058
        %v1229 = vpop.f32.mrb[0].mxu0
        %v1230 = vadd.f32 0.0, %v1229
        %v1231 = vpop.f32.mrb[0].mxu0
        %1232 = vmatprep.mubr.f32.mxu0 0.0
        %1233 = vmatmul.mubr.f32.gmra.mrb[0].mxu0 %v1061
        %v1234 = vpop.f32.mrb[0].mxu0
        %v1235 = vadd.f32 0.0, %v1234
        %v1236 = vpop.f32.mrb[0].mxu0
        %1237 = vmatprep.mubr.f32.mxu0 0.0
        %1238 = vmatmul.mubr.f32.gmra.mrb[0].mxu0 %v1064
        %v1239 = vpop.f32.mrb[0].mxu0
        %v1240 = vadd.f32 0.0, %v1239
        %v1241 = vpop.f32.mrb[0].mxu0
        %1242 = vmatprep.mubr.f32.mxu0 0.0
        %1243 = vmatmul.mubr.f32.gmra.mrb[0].mxu0 %v1067
        %v1244 = vpop.f32.mrb[0].mxu0
        %v1245 = vadd.f32 0.0, %v1244
        %v1246 = vpop.f32.mrb[0].mxu0
        %1247 = vmatprep.mubr.f32.mxu0 0.0
        %1248 = vmatmul.mubr.f32.gmra.mrb[0].mxu0 %v1070
        %v1249 = vpop.f32.mrb[0].mxu0
        %v1250 = vadd.f32 0.0, %v1249
        %v1251 = vpop.f32.mrb[0].mxu0
        %1252 = vmatprep.mubr.f32.mxu0 0.0
        %1253 = vmatmul.mubr.f32.gmra.mrb[0].mxu0 %v1073
        %v1254 = vpop.f32.mrb[0].mxu0
        %v1255 = vadd.f32 0.0, %v1254
        %v1256 = vpop.f32.mrb[0].mxu0
        %1257 = vmatprep.mubr.f32.mxu0 0.0
        %1258 = vmatmul.mubr.f32.gmra.mrb[0].mxu0 %v1076
        %v1259 = vpop.f32.mrb[0].mxu0
        %v1260 = vadd.f32 0.0, %v1259
        %v1261 = vpop.f32.mrb[0].mxu0
        %1262 = vmatprep.mubr.f32.mxu0 0.0
        %1263 = vmatmul.mubr.f32.gmra.mrb[0].mxu0 %v1079
        %v1264 = vpop.f32.mrb[0].mxu0
        %v1265 = vadd.f32 0.0, %v1264
        %v1266 = vpop.f32.mrb[0].mxu0
        %1267 = vmatprep.mubr.f32.mxu0 0.0
        %1268 = vmatmul.mubr.f32.gmra.mrb[0].mxu0 %v1082
        %v1269 = vpop.f32.mrb[0].mxu0
        %v1270 = vadd.f32 0.0, %v1269
        %v1271 = vpop.f32.mrb[0].mxu0
        %1272 = vmatprep.mubr.f32.mxu0 0.0
        %1273 = vmatmul.mubr.f32.gmra.mrb[0].mxu0 %v1085
        %v1274 = vpop.f32.mrb[0].mxu0
        %v1275 = vadd.f32 0.0, %v1274
        %v1276 = vpop.f32.mrb[0].mxu0
        %1277 = vmatprep.mubr.f32.mxu0 0.0
        %1278 = vmatmul.mubr.f32.gmra.mrb[0].mxu0 %v1088
        %v1279 = vpop.f32.mrb[0].mxu0
        %v1280 = vadd.f32 0.0, %v1279
        %v1281 = vpop.f32.mrb[0].mxu0
        %1282 = vdwg.mxu0
        %v1283 = vmul.f32 %v1205, 0.5
        %v1284 = vmul.f32 %v1210, 0.5
        %v1285 = vmul.f32 %v1215, 0.5
        %v1286 = vmul.f32 %v1220, 0.5
        %v1287 = vmul.f32 %v1225, 0.5
        %v1288 = vmul.f32 %v1230, 0.5
        %v1289 = vmul.f32 %v1235, 0.5
        %v1290 = vmul.f32 %v1240, 0.5
        %v1291 = vmul.f32 %v1245, 0.5
        %v1292 = vmul.f32 %v1250, 0.5
        %v1293 = vmul.f32 %v1255, 0.5
        %v1294 = vmul.f32 %v1260, 0.5
        %v1295 = vmul.f32 %v1265, 0.5
        %v1296 = vmul.f32 %v1270, 0.5
        %v1297 = vmul.f32 %v1275, 0.5
        %v1298 = vmul.f32 %v1280, 0.5
        %v1299 = vlaneseq
        %v1300 = vand.u32 %v1299, 127
        %vm1301 = vcmp.lt.s32.totalorder %v1300, 8
        %v1302 = vsel %vm1301, %v1283, -1e+30
        %v1303 = vsel %vm1301, %v1284, -1e+30
        %v1304 = vsel %vm1301, %v1285, -1e+30
        %v1305 = vsel %vm1301, %v1286, -1e+30
        %v1306 = vsel %vm1301, %v1287, -1e+30
        %v1307 = vsel %vm1301, %v1288, -1e+30
        %v1308 = vsel %vm1301, %v1289, -1e+30
        %v1309 = vsel %vm1301, %v1290, -1e+30
        %v1310 = vsel %vm1301, %v1291, -1e+30
        %v1311 = vsel %vm1301, %v1292, -1e+30
        %v1312 = vsel %vm1301, %v1293, -1e+30
        %v1313 = vsel %vm1301, %v1294, -1e+30
        %v1314 = vsel %vm1301, %v1295, -1e+30
        %v1315 = vsel %vm1301, %v1296, -1e+30
        %v1316 = vsel %vm1301, %v1297, -1e+30
        %v1317 = vsel %vm1301, %v1298, -1e+30
        %1318 = vmax.xlane.f32.xlu0 %v1302
        %v1319 = vpop.xlane.xlu0 %1318
        %1320 = vmax.xlane.f32.xlu0 %v1303
        %v1321 = vpop.xlane.xlu0 %1320
        %1322 = vmax.xlane.f32.xlu0 %v1304
        %v1323 = vpop.xlane.xlu0 %1322
        %1324 = vmax.xlane.f32.xlu0 %v1305
        %v1325 = vpop.xlane.xlu0 %1324
        %1326 = vmax.xlane.f32.xlu0 %v1306
        %v1327 = vpop.xlane.xlu0 %1326
        %1328 = vmax.xlane.f32.xlu0 %v1307
        %v1329 = vpop.xlane.xlu0 %1328
        %1330 = vmax.xlane.f32.xlu0 %v1308
        %v1331 = vpop.xlane.xlu0 %1330
        %1332 = vmax.xlane.f32.xlu0 %v1309
        %v1333 = vpop.xlane.xlu0 %1332
        %1334 = vmax.xlane.f32.xlu0 %v1310
        %v1335 = vpop.xlane.xlu0 %1334
        %1336 = vmax.xlane.f32.xlu0 %v1311
        %v1337 = vpop.xlane.xlu0 %1336
        %1338 = vmax.xlane.f32.xlu0 %v1312
        %v1339 = vpop.xlane.xlu0 %1338
        %1340 = vmax.xlane.f32.xlu0 %v1313
        %v1341 = vpop.xlane.xlu0 %1340
        %1342 = vmax.xlane.f32.xlu0 %v1314
        %v1343 = vpop.xlane.xlu0 %1342
        %1344 = vmax.xlane.f32.xlu0 %v1315
        %v1345 = vpop.xlane.xlu0 %1344
        %1346 = vmax.xlane.f32.xlu0 %v1316
        %v1347 = vpop.xlane.xlu0 %1346
        %1348 = vmax.xlane.f32.xlu0 %v1317
        %v1349 = vpop.xlane.xlu0 %1348
        %v1350 = vsub.f32 %v1302, %v1319
        %v1351 = vsub.f32 %v1303, %v1321
        %v1352 = vsub.f32 %v1304, %v1323
        %v1353 = vsub.f32 %v1305, %v1325
        %v1354 = vsub.f32 %v1306, %v1327
        %v1355 = vsub.f32 %v1307, %v1329
        %v1356 = vsub.f32 %v1308, %v1331
        %v1357 = vsub.f32 %v1309, %v1333
        %v1358 = vsub.f32 %v1310, %v1335
        %v1359 = vsub.f32 %v1311, %v1337
        %v1360 = vsub.f32 %v1312, %v1339
        %v1361 = vsub.f32 %v1313, %v1341
        %v1362 = vsub.f32 %v1314, %v1343
        %v1363 = vsub.f32 %v1315, %v1345
        %v1364 = vsub.f32 %v1316, %v1347
        %v1365 = vsub.f32 %v1317, %v1349
        %v1366 = vmul.f32 %v1350, 1.442695
        %v1367 = vpow.pop %v1366
        %v1368 = vmul.f32 %v1351, 1.442695
        %v1369 = vpow.pop %v1368
        %v1370 = vmul.f32 %v1352, 1.442695
        %v1371 = vpow.pop %v1370
        %v1372 = vmul.f32 %v1353, 1.442695
        %v1373 = vpow.pop %v1372
        %v1374 = vmul.f32 %v1354, 1.442695
        %v1375 = vpow.pop %v1374
        %v1376 = vmul.f32 %v1355, 1.442695
        %v1377 = vpow.pop %v1376
        %v1378 = vmul.f32 %v1356, 1.442695
        %v1379 = vpow.pop %v1378
        %v1380 = vmul.f32 %v1357, 1.442695
        %v1381 = vpow.pop %v1380
        %v1382 = vmul.f32 %v1358, 1.442695
        %v1383 = vpow.pop %v1382
        %v1384 = vmul.f32 %v1359, 1.442695
        %v1385 = vpow.pop %v1384
        %v1386 = vmul.f32 %v1360, 1.442695
        %v1387 = vpow.pop %v1386
        %v1388 = vmul.f32 %v1361, 1.442695
        %v1389 = vpow.pop %v1388
        %v1390 = vmul.f32 %v1362, 1.442695
        %v1391 = vpow.pop %v1390
        %v1392 = vmul.f32 %v1363, 1.442695
        %v1393 = vpow.pop %v1392
        %v1394 = vmul.f32 %v1364, 1.442695
        %v1395 = vpow.pop %v1394
        %v1396 = vmul.f32 %v1365, 1.442695
        %v1397 = vpow.pop %v1396
        %1398 = vadd.xlane.f32.xlu0 %v1367
        %v1399 = vpop.xlane.xlu0 %1398
        %1400 = vadd.xlane.f32.xlu0 %v1369
        %v1401 = vpop.xlane.xlu0 %1400
        %1402 = vadd.xlane.f32.xlu0 %v1371
        %v1403 = vpop.xlane.xlu0 %1402
        %1404 = vadd.xlane.f32.xlu0 %v1373
        %v1405 = vpop.xlane.xlu0 %1404
        %1406 = vadd.xlane.f32.xlu0 %v1375
        %v1407 = vpop.xlane.xlu0 %1406
        %1408 = vadd.xlane.f32.xlu0 %v1377
        %v1409 = vpop.xlane.xlu0 %1408
        %1410 = vadd.xlane.f32.xlu0 %v1379
        %v1411 = vpop.xlane.xlu0 %1410
        %1412 = vadd.xlane.f32.xlu0 %v1381
        %v1413 = vpop.xlane.xlu0 %1412
        %1414 = vadd.xlane.f32.xlu0 %v1383
        %v1415 = vpop.xlane.xlu0 %1414
        %1416 = vadd.xlane.f32.xlu0 %v1385
        %v1417 = vpop.xlane.xlu0 %1416
        %1418 = vadd.xlane.f32.xlu0 %v1387
        %v1419 = vpop.xlane.xlu0 %1418
        %1420 = vadd.xlane.f32.xlu0 %v1389
        %v1421 = vpop.xlane.xlu0 %1420
        %1422 = vadd.xlane.f32.xlu0 %v1391
        %v1423 = vpop.xlane.xlu0 %1422
        %1424 = vadd.xlane.f32.xlu0 %v1393
        %v1425 = vpop.xlane.xlu0 %1424
        %1426 = vadd.xlane.f32.xlu0 %v1395
        %v1427 = vpop.xlane.xlu0 %1426
        %1428 = vadd.xlane.f32.xlu0 %v1397
        %v1429 = vpop.xlane.xlu0 %1428
        %v1430 = vrcp.pop %v1399
        %v1431 = vrcp.pop %v1401
        %v1432 = vrcp.pop %v1403
        %v1433 = vrcp.pop %v1405
        %v1434 = vrcp.pop %v1407
        %v1435 = vrcp.pop %v1409
        %v1436 = vrcp.pop %v1411
        %v1437 = vrcp.pop %v1413
        %v1438 = vrcp.pop %v1415
        %v1439 = vrcp.pop %v1417
        %v1440 = vrcp.pop %v1419
        %v1441 = vrcp.pop %v1421
        %v1442 = vrcp.pop %v1423
        %v1443 = vrcp.pop %v1425
        %v1444 = vrcp.pop %v1427
        %v1445 = vrcp.pop %v1429
        %v1446 = vmul.f32 %v1367, %v1430
        %v1447 = vmul.f32 %v1369, %v1431
        %v1448 = vmul.f32 %v1371, %v1432
        %v1449 = vmul.f32 %v1373, %v1433
        %v1450 = vmul.f32 %v1375, %v1434
        %v1451 = vmul.f32 %v1377, %v1435
        %v1452 = vmul.f32 %v1379, %v1436
        %v1453 = vmul.f32 %v1381, %v1437
        %v1454 = vmul.f32 %v1383, %v1438
        %v1455 = vmul.f32 %v1385, %v1439
        %v1456 = vmul.f32 %v1387, %v1440
        %v1457 = vmul.f32 %v1389, %v1441
        %v1458 = vmul.f32 %v1391, %v1442
        %v1459 = vmul.f32 %v1393, %v1443
        %v1460 = vmul.f32 %v1395, %v1444
        %v1461 = vmul.f32 %v1397, %v1445
        %1462 = vst [vmem:[%s419] sm:$0xff] %v1446
        %1463 = vst [vmem:[%s419 + $0x8] sm:$0xff] %v1447
        %1464 = vst [vmem:[%s419 + $0x10] sm:$0xff] %v1448
        %1465 = vst [vmem:[%s419 + $0x18] sm:$0xff] %v1449
        %1466 = vst [vmem:[%s419 + $0x20] sm:$0xff] %v1450
        %1467 = vst [vmem:[%s419 + $0x28] sm:$0xff] %v1451
        %1468 = vst [vmem:[%s419 + $0x30] sm:$0xff] %v1452
        %1469 = vst [vmem:[%s419 + $0x38] sm:$0xff] %v1453
        %1470 = vst [vmem:[%s419 + $0x40] sm:$0xff] %v1454
        %1471 = vst [vmem:[%s419 + $0x48] sm:$0xff] %v1455
        %1472 = vst [vmem:[%s419 + $0x50] sm:$0xff] %v1456
        %1473 = vst [vmem:[%s419 + $0x58] sm:$0xff] %v1457
        %1474 = vst [vmem:[%s419 + $0x60] sm:$0xff] %v1458
        %1475 = vst [vmem:[%s419 + $0x68] sm:$0xff] %v1459
        %1476 = vst [vmem:[%s419 + $0x70] sm:$0xff] %v1460
        %1477 = vst [vmem:[%s419 + $0x78] sm:$0xff] %v1461
        %1478 = vmatprep.subr.mxu0 0.0
        %1479 = vmatpush1.msra.mxu0 %v963
        %1480 = vmatprep.subr.mxu0 0.0
        %1481 = vmatpush1.msra.mxu0 %v968
        %1482 = vmatprep.subr.mxu0 0.0
        %1483 = vmatpush1.msra.mxu0 %v973
        %1484 = vmatprep.subr.mxu0 0.0
        %1485 = vmatpush1.msra.mxu0 %v978
        %1486 = vmatprep.subr.mxu0 0.0
        %1487 = vmatpush1.msra.mxu0 %v983
        %1488 = vmatprep.subr.mxu0 0.0
        %1489 = vmatpush1.msra.mxu0 %v988
        %1490 = vmatprep.subr.mxu0 0.0
        %1491 = vmatpush1.msra.mxu0 %v993
        %1492 = vmatprep.subr.mxu0 0.0
        %1493 = vmatpush1.msra.mxu0 %v998
        %1494 = vmatprep.subr.mxu0 0.0
        %1495 = vmatpush1.msra.mxu0 %v1003
        %1496 = vmatprep.subr.mxu0 0.0
        %1497 = vmatpush1.msra.mxu0 %v1008
        %1498 = vmatprep.subr.mxu0 0.0
        %1499 = vmatpush1.msra.mxu0 %v1013
        %1500 = vmatprep.subr.mxu0 0.0
        %1501 = vmatpush1.msra.mxu0 %v1018
        %1502 = vmatprep.subr.mxu0 0.0
        %1503 = vmatpush1.msra.mxu0 %v1023
        %1504 = vmatprep.subr.mxu0 0.0
        %1505 = vmatpush1.msra.mxu0 %v1028
        %1506 = vmatprep.subr.mxu0 0.0
        %1507 = vmatpush1.msra.mxu0 %v1033
        %1508 = vmatprep.subr.mxu0 0.0
        %1509 = vmatpush1.msra.mxu0 %v1038
        %1510 = vmatprep.subr.mxu0 0.0
        %1511 = vmatpush1.msra.mxu0 0.0
        %1512 = vmatprep.subr.mxu0 0.0
        %1513 = vmatpush1.msra.mxu0 0.0
        %1514 = vmatprep.subr.mxu0 0.0
        %1515 = vmatpush1.msra.mxu0 0.0
        %1516 = vmatprep.subr.mxu0 0.0
        %1517 = vmatpush1.msra.mxu0 0.0
        %1518 = vmatprep.subr.mxu0 0.0
        %1519 = vmatpush1.msra.mxu0 0.0
        %1520 = vmatprep.subr.mxu0 0.0
        %1521 = vmatpush1.msra.mxu0 0.0
        %1522 = vmatprep.subr.mxu0 0.0
        %1523 = vmatpush1.msra.mxu0 0.0
        %1524 = vmatprep.subr.mxu0 0.0
        %1525 = vmatpush1.msra.mxu0 0.0
        %1526 = vmatprep.subr.mxu0 0.0
        %1527 = vmatpush1.msra.mxu0 0.0
        %1528 = vmatprep.subr.mxu0 0.0
        %1529 = vmatpush1.msra.mxu0 0.0
        %1530 = vmatprep.subr.mxu0 0.0
        %1531 = vmatpush1.msra.mxu0 0.0
        %1532 = vmatprep.subr.mxu0 0.0
        %1533 = vmatpush1.msra.mxu0 0.0
        %1534 = vmatprep.subr.mxu0 0.0
        %1535 = vmatpush1.msra.mxu0 0.0
        %1536 = vmatprep.subr.mxu0 0.0
        %1537 = vmatpush1.msra.mxu0 0.0
        %1538 = vmatprep.subr.mxu0 0.0
        %1539 = vmatpush1.msra.mxu0 0.0
        %1540 = vmatprep.subr.mxu0 0.0
        %1541 = vmatpush1.msra.mxu0 0.0
        %1542 = vmatprep.mubr.f32.mxu0 0.0
        %1543 = vmatmul.mubr.f32.gmra.mrb[0].mxu0 %v1446
        %v1544 = vpop.f32.mrb[0].mxu0
        %v1545 = vadd.f32 0.0, %v1544
        %v1546 = vpop.f32.mrb[0].mxu0
        %1547 = vmatprep.mubr.f32.mxu0 0.0
        %1548 = vmatmul.mubr.f32.gmra.mrb[0].mxu0 %v1447
        %v1549 = vpop.f32.mrb[0].mxu0
        %v1550 = vadd.f32 0.0, %v1549
        %v1551 = vpop.f32.mrb[0].mxu0
        %1552 = vmatprep.mubr.f32.mxu0 0.0
        %1553 = vmatmul.mubr.f32.gmra.mrb[0].mxu0 %v1448
        %v1554 = vpop.f32.mrb[0].mxu0
        %v1555 = vadd.f32 0.0, %v1554
        %v1556 = vpop.f32.mrb[0].mxu0
        %1557 = vmatprep.mubr.f32.mxu0 0.0
        %1558 = vmatmul.mubr.f32.gmra.mrb[0].mxu0 %v1449
        %v1559 = vpop.f32.mrb[0].mxu0
        %v1560 = vadd.f32 0.0, %v1559
        %v1561 = vpop.f32.mrb[0].mxu0
        %1562 = vmatprep.mubr.f32.mxu0 0.0
        %1563 = vmatmul.mubr.f32.gmra.mrb[0].mxu0 %v1450
        %v1564 = vpop.f32.mrb[0].mxu0
        %v1565 = vadd.f32 0.0, %v1564
        %v1566 = vpop.f32.mrb[0].mxu0
        %1567 = vmatprep.mubr.f32.mxu0 0.0
        %1568 = vmatmul.mubr.f32.gmra.mrb[0].mxu0 %v1451
        %v1569 = vpop.f32.mrb[0].mxu0
        %v1570 = vadd.f32 0.0, %v1569
        %v1571 = vpop.f32.mrb[0].mxu0
        %1572 = vmatprep.mubr.f32.mxu0 0.0
        %1573 = vmatmul.mubr.f32.gmra.mrb[0].mxu0 %v1452
        %v1574 = vpop.f32.mrb[0].mxu0
        %v1575 = vadd.f32 0.0, %v1574
        %v1576 = vpop.f32.mrb[0].mxu0
        %1577 = vmatprep.mubr.f32.mxu0 0.0
        %1578 = vmatmul.mubr.f32.gmra.mrb[0].mxu0 %v1453
        %v1579 = vpop.f32.mrb[0].mxu0
        %v1580 = vadd.f32 0.0, %v1579
        %v1581 = vpop.f32.mrb[0].mxu0
        %1582 = vmatprep.mubr.f32.mxu0 0.0
        %1583 = vmatmul.mubr.f32.gmra.mrb[0].mxu0 %v1454
        %v1584 = vpop.f32.mrb[0].mxu0
        %v1585 = vadd.f32 0.0, %v1584
        %v1586 = vpop.f32.mrb[0].mxu0
        %1587 = vmatprep.mubr.f32.mxu0 0.0
        %1588 = vmatmul.mubr.f32.gmra.mrb[0].mxu0 %v1455
        %v1589 = vpop.f32.mrb[0].mxu0
        %v1590 = vadd.f32 0.0, %v1589
        %v1591 = vpop.f32.mrb[0].mxu0
        %1592 = vmatprep.mubr.f32.mxu0 0.0
        %1593 = vmatmul.mubr.f32.gmra.mrb[0].mxu0 %v1456
        %v1594 = vpop.f32.mrb[0].mxu0
        %v1595 = vadd.f32 0.0, %v1594
        %v1596 = vpop.f32.mrb[0].mxu0
        %1597 = vmatprep.mubr.f32.mxu0 0.0
        %1598 = vmatmul.mubr.f32.gmra.mrb[0].mxu0 %v1457
        %v1599 = vpop.f32.mrb[0].mxu0
        %v1600 = vadd.f32 0.0, %v1599
        %v1601 = vpop.f32.mrb[0].mxu0
        %1602 = vmatprep.mubr.f32.mxu0 0.0
        %1603 = vmatmul.mubr.f32.gmra.mrb[0].mxu0 %v1458
        %v1604 = vpop.f32.mrb[0].mxu0
        %v1605 = vadd.f32 0.0, %v1604
        %v1606 = vpop.f32.mrb[0].mxu0
        %1607 = vmatprep.mubr.f32.mxu0 0.0
        %1608 = vmatmul.mubr.f32.gmra.mrb[0].mxu0 %v1459
        %v1609 = vpop.f32.mrb[0].mxu0
        %v1610 = vadd.f32 0.0, %v1609
        %v1611 = vpop.f32.mrb[0].mxu0
        %1612 = vmatprep.mubr.f32.mxu0 0.0
        %1613 = vmatmul.mubr.f32.gmra.mrb[0].mxu0 %v1460
        %v1614 = vpop.f32.mrb[0].mxu0
        %v1615 = vadd.f32 0.0, %v1614
        %v1616 = vpop.f32.mrb[0].mxu0
        %1617 = vmatprep.mubr.f32.mxu0 0.0
        %1618 = vmatmul.mubr.f32.gmra.mrb[0].mxu0 %v1461
        %v1619 = vpop.f32.mrb[0].mxu0
        %v1620 = vadd.f32 0.0, %v1619
        %v1621 = vpop.f32.mrb[0].mxu0
        %1622 = vdwg.mxu0
        %v1623 = vld [vmem:[%s453] sm:$0xf]
        %v1625 = vsel %vm1041, %v1545, 0
        %v1628 = vsel %vm1041, %v1550, 0
        %v1631 = vsel %vm1041, %v1555, 0
        %v1634 = vsel %vm1041, %v1560, 0
        %v1637 = vsel %vm1041, %v1565, 0
        %v1640 = vsel %vm1041, %v1570, 0
        %v1643 = vsel %vm1041, %v1575, 0
        %v1646 = vsel %vm1041, %v1580, 0
        %v1649 = vsel %vm1041, %v1585, 0
        %v1652 = vsel %vm1041, %v1590, 0
        %v1655 = vsel %vm1041, %v1595, 0
        %v1658 = vsel %vm1041, %v1600, 0
        %v1661 = vsel %vm1041, %v1605, 0
        %v1664 = vsel %vm1041, %v1610, 0
        %v1667 = vsel %vm1041, %v1615, 0
        %v1670 = vsel %vm1041, %v1620, 0
        %vm1672 = vcmask 1043456
        %v1674 = vsel %vm1672, %v1623, 0
        %1676 = vmatprep.subr.mxu0 0.0
        %1677 = vmatpush1.msra.mxu0 %v1674
        %1678 = vmatprep.subr.mxu0 0.0
        %1679 = vmatpush1.msra.mxu0 0.0
        %1680 = vmatprep.subr.mxu0 0.0
        %1681 = vmatpush1.msra.mxu0 0.0
        %1682 = vmatprep.subr.mxu0 0.0
        %1683 = vmatpush1.msra.mxu0 0.0
        %1684 = vmatprep.subr.mxu0 0.0
        %1685 = vmatpush1.msra.mxu0 0.0
        %1686 = vmatprep.subr.mxu0 0.0
        %1687 = vmatpush1.msra.mxu0 0.0
        %1688 = vmatprep.subr.mxu0 0.0
        %1689 = vmatpush1.msra.mxu0 0.0
        %1690 = vmatprep.subr.mxu0 0.0
        %1691 = vmatpush1.msra.mxu0 0.0
        %1692 = vmatprep.subr.mxu0 0.0
        %1693 = vmatpush1.msra.mxu0 0.0
        %1694 = vmatprep.subr.mxu0 0.0
        %1695 = vmatpush1.msra.mxu0 0.0
        %1696 = vmatprep.subr.mxu0 0.0
        %1697 = vmatpush1.msra.mxu0 0.0
        %1698 = vmatprep.subr.mxu0 0.0
        %1699 = vmatpush1.msra.mxu0 0.0
        %1700 = vmatprep.subr.mxu0 0.0
        %1701 = vmatpush1.msra.mxu0 0.0
        %1702 = vmatprep.subr.mxu0 0.0
        %1703 = vmatpush1.msra.mxu0 0.0
        %1704 = vmatprep.subr.mxu0 0.0
        %1705 = vmatpush1.msra.mxu0 0.0
        %1706 = vmatprep.subr.mxu0 0.0
        %1707 = vmatpush1.msra.mxu0 0.0
        %1708 = vmatprep.subr.mxu0 0.0
        %1709 = vmatpush1.msra.mxu0 0.0
        %1710 = vmatprep.subr.mxu0 0.0
        %1711 = vmatpush1.msra.mxu0 0.0
        %1712 = vmatprep.subr.mxu0 0.0
        %1713 = vmatpush1.msra.mxu0 0.0
        %1714 = vmatprep.subr.mxu0 0.0
        %1715 = vmatpush1.msra.mxu0 0.0
        %1716 = vmatprep.subr.mxu0 0.0
        %1717 = vmatpush1.msra.mxu0 0.0
        %1718 = vmatprep.subr.mxu0 0.0
        %1719 = vmatpush1.msra.mxu0 0.0
        %1720 = vmatprep.subr.mxu0 0.0
        %1721 = vmatpush1.msra.mxu0 0.0
        %1722 = vmatprep.subr.mxu0 0.0
        %1723 = vmatpush1.msra.mxu0 0.0
        %1724 = vmatprep.subr.mxu0 0.0
        %1725 = vmatpush1.msra.mxu0 0.0
        %1726 = vmatprep.subr.mxu0 0.0
        %1727 = vmatpush1.msra.mxu0 0.0
        %1728 = vmatprep.subr.mxu0 0.0
        %1729 = vmatpush1.msra.mxu0 0.0
        %1730 = vmatprep.subr.mxu0 0.0
        %1731 = vmatpush1.msra.mxu0 0.0
        %1732 = vmatprep.subr.mxu0 0.0
        %1733 = vmatpush1.msra.mxu0 0.0
        %1734 = vmatprep.subr.mxu0 0.0
        %1735 = vmatpush1.msra.mxu0 0.0
        %1736 = vmatprep.subr.mxu0 0.0
        %1737 = vmatpush1.msra.mxu0 0.0
        %1738 = vmatprep.subr.mxu0 0.0
        %1739 = vmatpush1.msra.mxu0 0.0
        %1740 = vmatprep.mubr.f32.mxu0 0.0
        %1741 = vmatmul.mubr.f32.gmra.mrb[0].mxu0 %v1625
        %v1742 = vpop.f32.mrb[0].mxu0
        %v1743 = vadd.f32 0.0, %v1742
        %v1744 = vpop.f32.mrb[0].mxu0
        %1745 = vmatprep.mubr.f32.mxu0 0.0
        %1746 = vmatmul.mubr.f32.gmra.mrb[0].mxu0 %v1628
        %v1747 = vpop.f32.mrb[0].mxu0
        %v1748 = vadd.f32 0.0, %v1747
        %v1749 = vpop.f32.mrb[0].mxu0
        %1750 = vmatprep.mubr.f32.mxu0 0.0
        %1751 = vmatmul.mubr.f32.gmra.mrb[0].mxu0 %v1631
        %v1752 = vpop.f32.mrb[0].mxu0
        %v1753 = vadd.f32 0.0, %v1752
        %v1754 = vpop.f32.mrb[0].mxu0
        %1755 = vmatprep.mubr.f32.mxu0 0.0
        %1756 = vmatmul.mubr.f32.gmra.mrb[0].mxu0 %v1634
        %v1757 = vpop.f32.mrb[0].mxu0
        %v1758 = vadd.f32 0.0, %v1757
        %v1759 = vpop.f32.mrb[0].mxu0
        %1760 = vmatprep.mubr.f32.mxu0 0.0
        %1761 = vmatmul.mubr.f32.gmra.mrb[0].mxu0 %v1637
        %v1762 = vpop.f32.mrb[0].mxu0
        %v1763 = vadd.f32 0.0, %v1762
        %v1764 = vpop.f32.mrb[0].mxu0
        %1765 = vmatprep.mubr.f32.mxu0 0.0
        %1766 = vmatmul.mubr.f32.gmra.mrb[0].mxu0 %v1640
        %v1767 = vpop.f32.mrb[0].mxu0
        %v1768 = vadd.f32 0.0, %v1767
        %v1769 = vpop.f32.mrb[0].mxu0
        %1770 = vmatprep.mubr.f32.mxu0 0.0
        %1771 = vmatmul.mubr.f32.gmra.mrb[0].mxu0 %v1643
        %v1772 = vpop.f32.mrb[0].mxu0
        %v1773 = vadd.f32 0.0, %v1772
        %v1774 = vpop.f32.mrb[0].mxu0
        %1775 = vmatprep.mubr.f32.mxu0 0.0
        %1776 = vmatmul.mubr.f32.gmra.mrb[0].mxu0 %v1646
        %v1777 = vpop.f32.mrb[0].mxu0
        %v1778 = vadd.f32 0.0, %v1777
        %v1779 = vpop.f32.mrb[0].mxu0
        %1780 = vmatprep.mubr.f32.mxu0 0.0
        %1781 = vmatmul.mubr.f32.gmra.mrb[0].mxu0 %v1649
        %v1782 = vpop.f32.mrb[0].mxu0
        %v1783 = vadd.f32 0.0, %v1782
        %v1784 = vpop.f32.mrb[0].mxu0
        %1785 = vmatprep.mubr.f32.mxu0 0.0
        %1786 = vmatmul.mubr.f32.gmra.mrb[0].mxu0 %v1652
        %v1787 = vpop.f32.mrb[0].mxu0
        %v1788 = vadd.f32 0.0, %v1787
        %v1789 = vpop.f32.mrb[0].mxu0
        %1790 = vmatprep.mubr.f32.mxu0 0.0
        %1791 = vmatmul.mubr.f32.gmra.mrb[0].mxu0 %v1655
        %v1792 = vpop.f32.mrb[0].mxu0
        %v1793 = vadd.f32 0.0, %v1792
        %v1794 = vpop.f32.mrb[0].mxu0
        %1795 = vmatprep.mubr.f32.mxu0 0.0
        %1796 = vmatmul.mubr.f32.gmra.mrb[0].mxu0 %v1658
        %v1797 = vpop.f32.mrb[0].mxu0
        %v1798 = vadd.f32 0.0, %v1797
        %v1799 = vpop.f32.mrb[0].mxu0
        %1800 = vmatprep.mubr.f32.mxu0 0.0
        %1801 = vmatmul.mubr.f32.gmra.mrb[0].mxu0 %v1661
        %v1802 = vpop.f32.mrb[0].mxu0
        %v1803 = vadd.f32 0.0, %v1802
        %v1804 = vpop.f32.mrb[0].mxu0
        %1805 = vmatprep.mubr.f32.mxu0 0.0
        %1806 = vmatmul.mubr.f32.gmra.mrb[0].mxu0 %v1664
        %v1807 = vpop.f32.mrb[0].mxu0
        %v1808 = vadd.f32 0.0, %v1807
        %v1809 = vpop.f32.mrb[0].mxu0
        %1810 = vmatprep.mubr.f32.mxu0 0.0
        %1811 = vmatmul.mubr.f32.gmra.mrb[0].mxu0 %v1667
        %v1812 = vpop.f32.mrb[0].mxu0
        %v1813 = vadd.f32 0.0, %v1812
        %v1814 = vpop.f32.mrb[0].mxu0
        %1815 = vmatprep.mubr.f32.mxu0 0.0
        %1816 = vmatmul.mubr.f32.gmra.mrb[0].mxu0 %v1670
        %v1817 = vpop.f32.mrb[0].mxu0
        %v1818 = vadd.f32 0.0, %v1817
        %v1819 = vpop.f32.mrb[0].mxu0
        %1820 = vdwg.mxu0
        %p1821 = scmp.eq.s32.totalorder %s30, 0
        // Predicated region
        $region49: #{tpu_custom_call.1} parent=47 // pred_check
          %p1822 = pneg %p1821
        $region50: #{tpu_custom_call.1} parent=47 // pred_check_branch
          %1824 = sbr.rel (%p1822) target = $region52
        $region51: #{tpu_custom_call.1} parent=47 // pred_region
          %1825 = vst.msk [vmem:[#allocation2] sm:$0xff] %vm501, 0.0
          %1826 = vst.msk [vmem:[#allocation2 + $0x8] sm:$0xff] %vm501, 0.0
          %1827 = vst.msk [vmem:[#allocation2 + $0x10] sm:$0xff] %vm501, 0.0
          %1828 = vst.msk [vmem:[#allocation2 + $0x18] sm:$0xff] %vm501, 0.0
          %1829 = vst.msk [vmem:[#allocation2 + $0x20] sm:$0xff] %vm501, 0.0
          %1830 = vst.msk [vmem:[#allocation2 + $0x28] sm:$0xff] %vm501, 0.0
          %1831 = vst.msk [vmem:[#allocation2 + $0x30] sm:$0xff] %vm501, 0.0
          %1832 = vst.msk [vmem:[#allocation2 + $0x38] sm:$0xff] %vm501, 0.0
          %1833 = vst.msk [vmem:[#allocation2 + $0x40] sm:$0xff] %vm501, 0.0
          %1834 = vst.msk [vmem:[#allocation2 + $0x48] sm:$0xff] %vm501, 0.0
          %1835 = vst.msk [vmem:[#allocation2 + $0x50] sm:$0xff] %vm501, 0.0
          %1836 = vst.msk [vmem:[#allocation2 + $0x58] sm:$0xff] %vm501, 0.0
          %1837 = vst.msk [vmem:[#allocation2 + $0x60] sm:$0xff] %vm501, 0.0
          %1838 = vst.msk [vmem:[#allocation2 + $0x68] sm:$0xff] %vm501, 0.0
          %1839 = vst.msk [vmem:[#allocation2 + $0x70] sm:$0xff] %vm501, 0.0
          %1840 = vst.msk [vmem:[#allocation2 + $0x78] sm:$0xff] %vm501, 0.0
        $region52: #{tpu_custom_call.1} parent=47 // pred_fallthru
          _
        %v1841 = vld [vmem:[#allocation2] sm:$0xff]
        %v1842 = vld [vmem:[#allocation2 + $0x8] sm:$0xff]
        %v1843 = vld [vmem:[#allocation2 + $0x10] sm:$0xff]
        %v1844 = vld [vmem:[#allocation2 + $0x18] sm:$0xff]
        %v1845 = vld [vmem:[#allocation2 + $0x20] sm:$0xff]
        %v1846 = vld [vmem:[#allocation2 + $0x28] sm:$0xff]
        %v1847 = vld [vmem:[#allocation2 + $0x30] sm:$0xff]
        %v1848 = vld [vmem:[#allocation2 + $0x38] sm:$0xff]
        %v1849 = vld [vmem:[#allocation2 + $0x40] sm:$0xff]
        %v1850 = vld [vmem:[#allocation2 + $0x48] sm:$0xff]
        %v1851 = vld [vmem:[#allocation2 + $0x50] sm:$0xff]
        %v1852 = vld [vmem:[#allocation2 + $0x58] sm:$0xff]
        %v1853 = vld [vmem:[#allocation2 + $0x60] sm:$0xff]
        %v1854 = vld [vmem:[#allocation2 + $0x68] sm:$0xff]
        %v1855 = vld [vmem:[#allocation2 + $0x70] sm:$0xff]
        %v1856 = vld [vmem:[#allocation2 + $0x78] sm:$0xff]
        %v1857 = vadd.f32 %v1841, %v1743
        %v1858 = vadd.f32 %v1842, %v1748
        %v1859 = vadd.f32 %v1843, %v1753
        %v1860 = vadd.f32 %v1844, %v1758
        %v1861 = vadd.f32 %v1845, %v1763
        %v1862 = vadd.f32 %v1846, %v1768
        %v1863 = vadd.f32 %v1847, %v1773
        %v1864 = vadd.f32 %v1848, %v1778
        %v1865 = vadd.f32 %v1849, %v1783
        %v1866 = vadd.f32 %v1850, %v1788
        %v1867 = vadd.f32 %v1851, %v1793
        %v1868 = vadd.f32 %v1852, %v1798
        %v1869 = vadd.f32 %v1853, %v1803
        %v1870 = vadd.f32 %v1854, %v1808
        %v1871 = vadd.f32 %v1855, %v1813
        %v1872 = vadd.f32 %v1856, %v1818
        %1873 = vst.msk [vmem:[#allocation2] sm:$0xff] %vm501, %v1857
        %1874 = vst.msk [vmem:[#allocation2 + $0x8] sm:$0xff] %vm501, %v1858
        %1875 = vst.msk [vmem:[#allocation2 + $0x10] sm:$0xff] %vm501, %v1859
        %1876 = vst.msk [vmem:[#allocation2 + $0x18] sm:$0xff] %vm501, %v1860
        %1877 = vst.msk [vmem:[#allocation2 + $0x20] sm:$0xff] %vm501, %v1861
        %1878 = vst.msk [vmem:[#allocation2 + $0x28] sm:$0xff] %vm501, %v1862
        %1879 = vst.msk [vmem:[#allocation2 + $0x30] sm:$0xff] %vm501, %v1863
        %1880 = vst.msk [vmem:[#allocation2 + $0x38] sm:$0xff] %vm501, %v1864
        %1881 = vst.msk [vmem:[#allocation2 + $0x40] sm:$0xff] %vm501, %v1865
        %1882 = vst.msk [vmem:[#allocation2 + $0x48] sm:$0xff] %vm501, %v1866
        %1883 = vst.msk [vmem:[#allocation2 + $0x50] sm:$0xff] %vm501, %v1867
        %1884 = vst.msk [vmem:[#allocation2 + $0x58] sm:$0xff] %vm501, %v1868
        %1885 = vst.msk [vmem:[#allocation2 + $0x60] sm:$0xff] %vm501, %v1869
        %1886 = vst.msk [vmem:[#allocation2 + $0x68] sm:$0xff] %vm501, %v1870
        %1887 = vst.msk [vmem:[#allocation2 + $0x70] sm:$0xff] %vm501, %v1871
        %1888 = vst.msk [vmem:[#allocation2 + $0x78] sm:$0xff] %vm501, %v1872
        %p1889 = scmp.eq.s32.totalorder %s30, 7
        // Predicated region
        $region53: #{tpu_custom_call.1} parent=47 // pred_check
          %p1890 = pneg %p1889
        $region54: #{tpu_custom_call.1} parent=47 // pred_check_branch
          %1892 = sbr.rel (%p1890) target = $region56
        $region55: #{tpu_custom_call.1} parent=47 // pred_region
          %v1893 = vld [vmem:[#allocation2] sm:$0xff]
          %v1894 = vld [vmem:[#allocation2 + $0x8] sm:$0xff]
          %v1895 = vld [vmem:[#allocation2 + $0x10] sm:$0xff]
          %v1896 = vld [vmem:[#allocation2 + $0x18] sm:$0xff]
          %v1897 = vld [vmem:[#allocation2 + $0x20] sm:$0xff]
          %v1898 = vld [vmem:[#allocation2 + $0x28] sm:$0xff]
          %v1899 = vld [vmem:[#allocation2 + $0x30] sm:$0xff]
          %v1900 = vld [vmem:[#allocation2 + $0x38] sm:$0xff]
          %v1901 = vld [vmem:[#allocation2 + $0x40] sm:$0xff]
          %v1902 = vld [vmem:[#allocation2 + $0x48] sm:$0xff]
          %v1903 = vld [vmem:[#allocation2 + $0x50] sm:$0xff]
          %v1904 = vld [vmem:[#allocation2 + $0x58] sm:$0xff]
          %v1905 = vld [vmem:[#allocation2 + $0x60] sm:$0xff]
          %v1906 = vld [vmem:[#allocation2 + $0x68] sm:$0xff]
          %v1907 = vld [vmem:[#allocation2 + $0x70] sm:$0xff]
          %v1908 = vld [vmem:[#allocation2 + $0x78] sm:$0xff]
          %v1909 = vld [vmem:[%s6] sm:$0x1]
          %v1911 = vlaneseq
          %v1912 = vshrl.u32 %v1911, 7
          %v1913 = vsub.s32 0, %v1912
          %v1914 = vrot.slane %v1909, %v1913
          %v1916 = vadd.f32 %v1893, %v1914
          %v1917 = vadd.f32 %v1894, %v1914
          %v1918 = vadd.f32 %v1895, %v1914
          %v1919 = vadd.f32 %v1896, %v1914
          %v1920 = vadd.f32 %v1897, %v1914
          %v1921 = vadd.f32 %v1898, %v1914
          %v1922 = vadd.f32 %v1899, %v1914
          %v1923 = vadd.f32 %v1900, %v1914
          %v1924 = vadd.f32 %v1901, %v1914
          %v1925 = vadd.f32 %v1902, %v1914
          %v1926 = vadd.f32 %v1903, %v1914
          %v1927 = vadd.f32 %v1904, %v1914
          %v1928 = vadd.f32 %v1905, %v1914
          %v1929 = vadd.f32 %v1906, %v1914
          %v1930 = vadd.f32 %v1907, %v1914
          %v1931 = vadd.f32 %v1908, %v1914
          %1932 = vst.msk [vmem:[%s462] sm:$0xff] %vm501, %v1916
          %1933 = vst.msk [vmem:[%s462 + $0x8] sm:$0xff] %vm501, %v1917
          %1934 = vst.msk [vmem:[%s462 + $0x10] sm:$0xff] %vm501, %v1918
          %1935 = vst.msk [vmem:[%s462 + $0x18] sm:$0xff] %vm501, %v1919
          %1936 = vst.msk [vmem:[%s462 + $0x20] sm:$0xff] %vm501, %v1920
          %1937 = vst.msk [vmem:[%s462 + $0x28] sm:$0xff] %vm501, %v1921
          %1938 = vst.msk [vmem:[%s462 + $0x30] sm:$0xff] %vm501, %v1922
          %1939 = vst.msk [vmem:[%s462 + $0x38] sm:$0xff] %vm501, %v1923
          %1940 = vst.msk [vmem:[%s462 + $0x40] sm:$0xff] %vm501, %v1924
          %1941 = vst.msk [vmem:[%s462 + $0x48] sm:$0xff] %vm501, %v1925
          %1942 = vst.msk [vmem:[%s462 + $0x50] sm:$0xff] %vm501, %v1926
          %1943 = vst.msk [vmem:[%s462 + $0x58] sm:$0xff] %vm501, %v1927
          %1944 = vst.msk [vmem:[%s462 + $0x60] sm:$0xff] %vm501, %v1928
          %1945 = vst.msk [vmem:[%s462 + $0x68] sm:$0xff] %vm501, %v1929
          %1946 = vst.msk [vmem:[%s462 + $0x70] sm:$0xff] %vm501, %v1930
          %1947 = vst.msk [vmem:[%s462 + $0x78] sm:$0xff] %vm501, %v1931
        $region56: #{tpu_custom_call.1} parent=47 // pred_fallthru
          _
        %s1948 = smul.u32 16, %s29
        %p1949 = scmp.lt.s32.totalorder %s28, 1
        %s1950 = scalar_select %p1949, %s28, 1
        %p1951 = scmp.lt.s32.totalorder %s1948, 15
        %s1952 = scalar_select %p1951, %s1948, 15
        %s1953 = smul.addr %s1950, 16
        %s1954 = sadd.s32 %s1952, %s1953
        %s1955 = smul.addr %s1954, 8
        %s1956 = scalar_lea.vmem %s7, %s1955
        %s1957 = sand.u32 %s261, 1
        %s1958 = scalar_lea.sflag [#allocation4], %s1957
        %s1959 = sand.u32 %s261, 1
        %s1960 = smul.addr %s1959, 128
        %s1961 = scalar_lea.vmem [#allocation3], %s1960
        // Predicated region
        $region57: #{tpu_custom_call.1} parent=47 // pred_check
          %p1962 = pneg %p241
        $region58: #{tpu_custom_call.1} parent=47 // pred_check_branch
          %1964 = sbr.rel (%p1962) target = $region60
        $region59: #{tpu_custom_call.1} parent=47 // pred_region
          %s1965 = smul.u32 16, %s29
        $region60: #{tpu_custom_call.1} parent=47 // pred_fallthru
          _
        // Predicated region
        $region61: #{tpu_custom_call.1} parent=47 // pred_check
          %p1966 = pneg %p271
        $region62: #{tpu_custom_call.1} parent=47 // pred_check_branch
          %1968 = sbr.rel (%p1966) target = $region64
        $region63: #{tpu_custom_call.1} parent=47 // pred_region
          %s1969 = smul.u32 16, %s29
          %s1971 = ssub.s32 2048, 2048
          %1972 = vsyncadd %s1958, %s1971
          %s1973 = smul.addr %s30, 16
          %s1974 = sadd.s32 %s1969, %s1973
          %s1975 = smul.addr %s28, 128
          %s1976 = sadd.s32 %s1974, %s1975
          %s1977 = smul.addr %s1976, 128
          %s1978 = scalar_lea.hbm %s8, %s1977
          %s1979 = sshll.u32 %s1961, 4
          %s1980 = int_to_ptr.vmem [resolvable:$true] %s1979
          %1985 = dma.vmem_to_hbm [thread:$0]  %s1980, 2048, %s1978, %s1958, 128, 128, 8
        $region64: #{tpu_custom_call.1} parent=47 // pred_fallthru
          _
      $region48: #{tpu_custom_call.1} parent=5 // pred_fallthru
        _
      %p1986 = scmp.le.s32.totalorder 2, %s18
      // Predicated region
      $region65: #{tpu_custom_call.1} parent=5 // pred_check
        %p1987 = pneg %p1986
      $region66: #{tpu_custom_call.1} parent=5 // pred_check_branch
        %1989 = sbr.rel (%p1987) target = $region68
      $region67: #{tpu_custom_call.1} parent=5 // pred_region
        %s1990 = ssub.s32 %s18, 2
        // Predicated region
        $region69: #{tpu_custom_call.1} parent=67 // pred_check
          %p1991 = pneg %p247
        $region70: #{tpu_custom_call.1} parent=67 // pred_check_branch
          %1993 = sbr.rel (%p1991) target = $region72
        $region71: #{tpu_custom_call.1} parent=67 // pred_region
          %s1994 = smul.u32 16, %s32
          %p1995 = scmp.lt.s32.totalorder %s31, 1
          %s1996 = scalar_select %p1995, %s31, 1
          %p1997 = scmp.lt.s32.totalorder %s1994, 15
          %s1998 = scalar_select %p1997, %s1994, 15
          %s1999 = smul.addr %s1996, 16
          %s2000 = sadd.s32 %s1998, %s1999
          %s2001 = smul.addr %s2000, 8
          %s2002 = scalar_lea.vmem %s7, %s2001
        $region72: #{tpu_custom_call.1} parent=67 // pred_fallthru
          _
        // Predicated region
        $region73: #{tpu_custom_call.1} parent=67 // pred_check
          %p2003 = pneg %p277
        $region74: #{tpu_custom_call.1} parent=67 // pred_check_branch
          %2005 = sbr.rel (%p2003) target = $region76
        $region75: #{tpu_custom_call.1} parent=67 // pred_region
          %s2006 = sand.u32 %s262, 1
          %s2007 = scalar_lea.sflag [#allocation4], %s2006
          %s2008 = sand.u32 %s262, 1
          %s2009 = smul.addr %s2008, 128
          %s2010 = scalar_lea.vmem [#allocation3], %s2009
          %2011 = dma.done %s2007, 2048
        $region76: #{tpu_custom_call.1} parent=67 // pred_fallthru
          _
      $region68: #{tpu_custom_call.1} parent=5 // pred_fallthru
        _
    $region6: #{tpu_custom_call.1} parent=1 // loop_footer
      %s22 = sadd.s32 1, %s18
    $region7: #{tpu_custom_call.1} parent=1 // loop_footer_branch
      %17 = sbr.rel target = $region3
    $region8: #{tpu_custom_call.1} parent=1 // loop_exit
      _
    %2012 = vsyncpa [#allocation4], 1
    %s2013 = scalar_lea.sflag [#allocation4], 1
    %2014 = vsyncpa %s2013, 1

</llo_original>
